<compile_context>
chip_gen: v5e
topology: v5e:2x2
jax: 0.10.0
libtpu: 0.0.40
codegen_flags: <defaults>
</compile_context>

<pallas_src>
import functools

import jax
import jax.numpy as jnp
import numpy as np
from jax.experimental import pallas as pl
from jax.experimental.pallas import tpu as pltpu


# --------------------------------------------------------------------------- #
# In-kernel helpers (static shapes, unrolled tiny loops).
# --------------------------------------------------------------------------- #
def _box2d(m, k, stride_h, rows_out):
    """K x K sliding-window sum of a 2-D map `m` (R, Cw).

    Window column starts are 0,1,2,... (unit stride); window row starts are
    0, stride_h, 2*stride_h, ...  Returns (rows_out, Cw - k + 1)."""
    w_valid = m.shape[1] - k + 1
    r = m[:, 0:w_valid]
    for kw in range(1, k):
        r = r + m[:, kw:kw + w_valid]
    if stride_h == 1:
        o = r[0:rows_out, :]
        for kh in range(1, k):
            o = o + r[kh:kh + rows_out, :]
    else:
        lim = stride_h * (rows_out - 1) + 1
        o = r[0:lim:stride_h, :]
        for kh in range(1, k):
            o = o + r[kh:kh + lim:stride_h, :]
    return o


def _take_cols(m, start, w_out, stride):
    if stride == 1:
        return m[:, start:start + w_out]
    return m[:, start:start + stride * (w_out - 1) + 1:stride]


# --------------------------------------------------------------------------- #
# Pallas kernel: one (batch, output-row-block) per grid step, all displacements.
# --------------------------------------------------------------------------- #
def _corr_zn_kernel(x0_ref, x1_ref, out_ref, *, k, sk, sd, ndisp, hb, w_out,
                    wp, eps, inv_f):
    a = x0_ref[0, 0]                    # (C, Hin, Wp)   f32
    b = x1_ref[0, 0]                    # (C, Hin, Wp1)  f32

    # ---- displacement-invariant statistics, computed ONCE per block -------- #
    a_sum = jnp.sum(a, axis=0)          # (Hin, Wp)   channel sums (VPU adds)
    a_sq = jnp.sum(a * a, axis=0)
    b_sum = jnp.sum(b, axis=0)          # (Hin, Wp1)
    b_sq = jnp.sum(b * b, axis=0)

    # x0 patch statistics: (Hb, W_out)
    s0 = _take_cols(_box2d(a_sum, k, sk, hb), 0, w_out, sk)
    q0 = _take_cols(_box2d(a_sq, k, sk, hb), 0, w_out, sk)
    l0 = jnp.sqrt(jnp.maximum(q0 - s0 * s0 * inv_f, 0.0))

    # x1 patch statistics over the FULL displacement range: (Hb, W_cols)
    s1f = _box2d(b_sum, k, sk, hb)
    q1f = _box2d(b_sq, k, sk, hb)
    l1f = jnp.sqrt(jnp.maximum(q1f - s1f * s1f * inv_f, 0.0))   # sqrt hoisted

    # ---- per-displacement: cross term only --------------------------------- #
    for t in range(ndisp):              # small static loop, unrolled
        off = t * sd
        bt = b[:, :, off:off + wp]                       # (C, Hin, Wp) lane slice
        dt = jnp.sum(a * bt, axis=0)                     # (Hin, Wp)
        raw = _take_cols(_box2d(dt, k, sk, hb), 0, w_out, sk)   # (Hb, W_out)
        s1t = _take_cols(s1f, off, w_out, sk)
        l1t = _take_cols(l1f, off, w_out, sk)
        num = raw - s0 * s1t * inv_f                     # sum(z0*z1)
        z = num * pl.reciprocal(l0 * l1t + eps, approx=True)
        out_ref[0, t] = z.astype(out_ref.dtype)          # direct NCHW write


# --------------------------------------------------------------------------- #
# Wrapper (the "Corr2DZNM.forward" equivalent).
# --------------------------------------------------------------------------- #
def corr2d_zn(x0, x1, max_displacement, padding=1, kernel_size=3,
              stride_k=1, stride_d=1, eps=1e-8, row_block=32):
    assert max_displacement > 0 and kernel_size > 0 and kernel_size % 2 == 1
    assert stride_k > 0 and stride_d > 0
    x0 = x0.astype(jnp.float32)
    x1 = x1.astype(jnp.float32)

    bsz, c, h, w = x0.shape
    k, sk, sd, p = kernel_size, stride_k, stride_d, padding
    nd = max_displacement // sd
    ndisp = 2 * nd + 1

    x0p = jnp.pad(x0, ((0, 0), (0, 0), (p, p), (p, p)))
    x1p = jnp.pad(x1, ((0, 0), (0, 0), (p, p), (p + nd * sd, p + nd * sd)))
    hp, wp = h + 2 * p, w + 2 * p
    wp1 = wp + 2 * nd * sd
    h_out = (hp - k) // sk + 1
    w_out = (wp - k) // sk + 1

    # Output-row blocking (multiple rows per grid step). Blocks carry a K-1 halo.
    if h_out <= row_block:
        hb, n_hblk, h_out_pad = h_out, 1, h_out
    else:
        assert row_block % 8 == 0
        hb = row_block
        h_out_pad = ((h_out + hb - 1) // hb) * hb
        n_hblk = h_out_pad // hb

    hin = (hb - 1) * sk + k                       # padded-input rows per block
    hp_need = (h_out_pad - 1) * sk + k
    if hp_need > hp:                              # zero rows -> zero output, cropped
        x0p = jnp.pad(x0p, ((0, 0), (0, 0), (0, hp_need - hp), (0, 0)))
        x1p = jnp.pad(x1p, ((0, 0), (0, 0), (0, hp_need - hp), (0, 0)))

    # (B, n_hblk, C, Hin, Wp[...]) with vertical halo; ~(1 + (K-sk)/(Hb*sk)) x raw.
    x0_blk = jnp.stack([x0p[:, :, i * hb * sk: i * hb * sk + hin, :]
                        for i in range(n_hblk)], axis=1)
    x1_blk = jnp.stack([x1p[:, :, i * hb * sk: i * hb * sk + hin, :]
                        for i in range(n_hblk)], axis=1)

    kernel = functools.partial(_corr_zn_kernel, k=k, sk=sk, sd=sd, ndisp=ndisp,
                               hb=hb, w_out=w_out, wp=wp, eps=eps,
                               inv_f=1.0 / float(c * k * k))

    out = pl.pallas_call(
        kernel,
        out_shape=jax.ShapeDtypeStruct((bsz, ndisp, h_out_pad, w_out),
                                       jnp.float32),
        grid_spec=pltpu.PrefetchScalarGridSpec(
            num_scalar_prefetch=0,
            grid=(bsz, n_hblk),
            in_specs=[
                pl.BlockSpec((1, 1, c, hin, wp),
                             lambda bi, hi: (bi, hi, 0, 0, 0)),
                pl.BlockSpec((1, 1, c, hin, wp1),
                             lambda bi, hi: (bi, hi, 0, 0, 0)),
            ],
            out_specs=pl.BlockSpec((1, ndisp, hb, w_out),
                                   lambda bi, hi: (bi, 0, hi, 0)),
        ),
        compiler_params=pltpu.CompilerParams(
            dimension_semantics=("parallel", "parallel"),
            # Safe on all generations; re-derive row_block / limit per chip
            # (v7x has 64 MiB VMEM vs 128 MiB on v5e/v6e).
            vmem_limit_bytes=32 * 1024 * 1024),
    )(x0_blk, x1_blk)

    return out[:, :, :h_out, :]                   # crop row padding (no-op here)


# --------------------------------------------------------------------------- #
# Pure-JAX reference (patch-based ZNCC, same semantics) for correctness check.
# --------------------------------------------------------------------------- #
def _extract_patches(x, k, stride_h, stride_w):
    """x: (B, C, Hp, Wp) -> (B, H_out, C*K*K, W_out)."""
    b, c, hp, wp = x.shape
    h_out = (hp - k) // stride_h + 1
    w_out = (wp - k) // stride_w + 1
    cols = []
    for kh in range(k):
        for kw in range(k):
            sl = x[:, :,
                   kh:kh + stride_h * (h_out - 1) + 1:stride_h,
                   kw:kw + stride_w * (w_out - 1) + 1:stride_w]
            cols.append(sl)
    pch = jnp.stack(cols, axis=2)
    pch = pch.reshape(b, c * k * k, h_out, w_out)
    return jnp.transpose(pch, (0, 2, 1, 3))


def corr2d_zn_ref(x0, x1, max_displacement, padding=1, kernel_size=3,
                  stride_k=1, stride_d=1, eps=1e-8):
    x0 = x0.astype(jnp.float32)
    x1 = x1.astype(jnp.float32)
    k, sk, sd, p = kernel_size, stride_k, stride_d, padding
    nd = max_displacement // sd
    ndisp = 2 * nd + 1
    x0p = jnp.pad(x0, ((0, 0), (0, 0), (p, p), (p, p)))
    x1p = jnp.pad(x1, ((0, 0), (0, 0), (p, p), (p + nd * sd, p + nd * sd)))
    hp, wp = x0.shape[2] + 2 * p, x0.shape[3] + 2 * p
    w_out = (wp - k) // sk + 1
    p0 = _extract_patches(x0p, k, sk, sk)
    p1 = _extract_patches(x1p, k, sk, 1)
    m0 = jnp.mean(p0, axis=2, keepdims=True)
    z0 = p0 - m0
    l0 = jnp.sqrt(jnp.sum(z0 * z0, axis=2, keepdims=True))
    outs = []
    for t in range(ndisp):
        start = t * sd
        p1t = p1[:, :, :, start:start + sk * (w_out - 1) + 1:sk]
        m1 = jnp.mean(p1t, axis=2, keepdims=True)
        z1 = p1t - m1
        l1 = jnp.sqrt(jnp.sum(z1 * z1, axis=2, keepdims=True))
        num = jnp.sum(z0 * z1, axis=2, keepdims=True)
        outs.append((num / (l0 * l1 + eps))[:, :, 0, :])     # (B, Ho, Wo)
    return jnp.stack(outs, axis=1)                            # (B, nd, Ho, Wo)


if __name__ == "__main__":
    # Module config (deterministic, no checkpoint): maxDisplacement=3, defaults.
    max_displacement, padding, kernel_size, stride_k, stride_d = 3, 1, 3, 1, 1

    key = jax.random.PRNGKey(0)
    k0, k1 = jax.random.split(key)
    x0 = jax.random.normal(k0, (2, 4, 16, 16), dtype=jnp.float32)   # NCHW
    x1 = jax.random.normal(k1, (2, 4, 16, 16), dtype=jnp.float32)   # NCHW

    out = corr2d_zn(x0, x1, max_displacement, padding, kernel_size,
                    stride_k, stride_d)
    out = jax.block_until_ready(out)

    ref = corr2d_zn_ref(x0, x1, max_displacement, padding, kernel_size,
                        stride_k, stride_d)
    # Tolerance accounts for the approximate EUP reciprocal and the one-pass
    # (Q - S^2/F) variance formulation; ZNCC values lie in [-1, 1].
    np.testing.assert_allclose(np.asarray(out), np.asarray(ref),
                               rtol=2e-3, atol=2e-3)
    assert out.shape == (2, 2 * (max_displacement // stride_d) + 1, 16, 16)

    print("KERNEL_OK")
</pallas_src>

<mosaic_0001>
module attributes {stable_mosaic.version = 11 : i64} {
  func.func @_corr_zn_kernel(%arg0: i32, %arg1: i32, %arg2: memref<1x1x4x18x18xf32, #tpu.memory_space<vmem>>, %arg3: memref<1x1x4x18x24xf32, #tpu.memory_space<vmem>>, %arg4: memref<1x7x16x16xf32, #tpu.memory_space<vmem>>) attributes {dimension_semantics = [#tpu.dimension_semantics<parallel>, #tpu.dimension_semantics<parallel>], iteration_bounds = array<i64: 2, 1>, scalar_prefetch = 0 : i64, scratch_operands = 0 : i64, tpu.core_type = #tpu.core_type<tc>, window_params = [{transform_indices = @transform_0, window_bounds = array<i64: 1, 1, 4, 18, 18>}, {transform_indices = @transform_1, window_bounds = array<i64: 1, 1, 4, 18, 24>}, {transform_indices = @transform_2, window_bounds = array<i64: 1, 7, 16, 16>}]} {
    %c0 = arith.constant 0 : index
    %c0_0 = arith.constant 0 : index
    %c0_1 = arith.constant 0 : index
    %c0_2 = arith.constant 0 : index
    %c0_3 = arith.constant 0 : index
    %0 = vector.load %arg2[%c0, %c0_0, %c0_1, %c0_2, %c0_3] : memref<1x1x4x18x18xf32, #tpu.memory_space<vmem>>, vector<1x1x4x18x18xf32>
    %1 = vector.shape_cast %0 : vector<1x1x4x18x18xf32> to vector<4x18x18xf32>
    %c0_4 = arith.constant 0 : index
    %c0_5 = arith.constant 0 : index
    %c0_6 = arith.constant 0 : index
    %c0_7 = arith.constant 0 : index
    %c0_8 = arith.constant 0 : index
    %2 = vector.load %arg3[%c0_4, %c0_5, %c0_6, %c0_7, %c0_8] : memref<1x1x4x18x24xf32, #tpu.memory_space<vmem>>, vector<1x1x4x18x24xf32>
    %3 = vector.shape_cast %2 : vector<1x1x4x18x24xf32> to vector<4x18x24xf32>
    %cst = arith.constant dense<0.000000e+00> : vector<18x18xf32>
    %4 = vector.multi_reduction <add>, %1, %cst [0] : vector<4x18x18xf32> to vector<18x18xf32>
    %5 = arith.mulf %1, %1 : vector<4x18x18xf32>
    %cst_9 = arith.constant dense<0.000000e+00> : vector<18x18xf32>
    %6 = vector.multi_reduction <add>, %5, %cst_9 [0] : vector<4x18x18xf32> to vector<18x18xf32>
    %cst_10 = arith.constant dense<0.000000e+00> : vector<18x24xf32>
    %7 = vector.multi_reduction <add>, %3, %cst_10 [0] : vector<4x18x24xf32> to vector<18x24xf32>
    %8 = arith.mulf %3, %3 : vector<4x18x24xf32>
    %cst_11 = arith.constant dense<0.000000e+00> : vector<18x24xf32>
    %9 = vector.multi_reduction <add>, %8, %cst_11 [0] : vector<4x18x24xf32> to vector<18x24xf32>
    %10 = vector.extract_strided_slice %4 {offsets = [0, 0], sizes = [18, 16], strides = [1, 1]} : vector<18x18xf32> to vector<18x16xf32>
    %11 = vector.extract_strided_slice %4 {offsets = [0, 1], sizes = [18, 16], strides = [1, 1]} : vector<18x18xf32> to vector<18x16xf32>
    %12 = arith.addf %10, %11 : vector<18x16xf32>
    %13 = vector.extract_strided_slice %4 {offsets = [0, 2], sizes = [18, 16], strides = [1, 1]} : vector<18x18xf32> to vector<18x16xf32>
    %14 = arith.addf %12, %13 : vector<18x16xf32>
    %15 = vector.extract_strided_slice %14 {offsets = [0, 0], sizes = [16, 16], strides = [1, 1]} : vector<18x16xf32> to vector<16x16xf32>
    %16 = vector.extract_strided_slice %14 {offsets = [1, 0], sizes = [16, 16], strides = [1, 1]} : vector<18x16xf32> to vector<16x16xf32>
    %17 = arith.addf %15, %16 : vector<16x16xf32>
    %18 = vector.extract_strided_slice %14 {offsets = [2, 0], sizes = [16, 16], strides = [1, 1]} : vector<18x16xf32> to vector<16x16xf32>
    %19 = arith.addf %17, %18 : vector<16x16xf32>
    %20 = vector.extract_strided_slice %6 {offsets = [0, 0], sizes = [18, 16], strides = [1, 1]} : vector<18x18xf32> to vector<18x16xf32>
    %21 = vector.extract_strided_slice %6 {offsets = [0, 1], sizes = [18, 16], strides = [1, 1]} : vector<18x18xf32> to vector<18x16xf32>
    %22 = arith.addf %20, %21 : vector<18x16xf32>
    %23 = vector.extract_strided_slice %6 {offsets = [0, 2], sizes = [18, 16], strides = [1, 1]} : vector<18x18xf32> to vector<18x16xf32>
    %24 = arith.addf %22, %23 : vector<18x16xf32>
    %25 = vector.extract_strided_slice %24 {offsets = [0, 0], sizes = [16, 16], strides = [1, 1]} : vector<18x16xf32> to vector<16x16xf32>
    %26 = vector.extract_strided_slice %24 {offsets = [1, 0], sizes = [16, 16], strides = [1, 1]} : vector<18x16xf32> to vector<16x16xf32>
    %27 = arith.addf %25, %26 : vector<16x16xf32>
    %28 = vector.extract_strided_slice %24 {offsets = [2, 0], sizes = [16, 16], strides = [1, 1]} : vector<18x16xf32> to vector<16x16xf32>
    %29 = arith.addf %27, %28 : vector<16x16xf32>
    %30 = arith.mulf %19, %19 : vector<16x16xf32>
    %cst_12 = arith.constant 0.027777778 : f32
    %31 = vector.broadcast %cst_12 : f32 to vector<16x16xf32>
    %32 = arith.mulf %30, %31 : vector<16x16xf32>
    %33 = arith.subf %29, %32 : vector<16x16xf32>
    %cst_13 = arith.constant 0.000000e+00 : f32
    %34 = vector.broadcast %cst_13 : f32 to vector<16x16xf32>
    %35 = arith.maximumf %33, %34 : vector<16x16xf32>
    %36 = math.sqrt %35 : vector<16x16xf32>
    %37 = vector.extract_strided_slice %7 {offsets = [0, 0], sizes = [18, 22], strides = [1, 1]} : vector<18x24xf32> to vector<18x22xf32>
    %38 = vector.extract_strided_slice %7 {offsets = [0, 1], sizes = [18, 22], strides = [1, 1]} : vector<18x24xf32> to vector<18x22xf32>
    %39 = arith.addf %37, %38 : vector<18x22xf32>
    %40 = vector.extract_strided_slice %7 {offsets = [0, 2], sizes = [18, 22], strides = [1, 1]} : vector<18x24xf32> to vector<18x22xf32>
    %41 = arith.addf %39, %40 : vector<18x22xf32>
    %42 = vector.extract_strided_slice %41 {offsets = [0, 0], sizes = [16, 22], strides = [1, 1]} : vector<18x22xf32> to vector<16x22xf32>
    %43 = vector.extract_strided_slice %41 {offsets = [1, 0], sizes = [16, 22], strides = [1, 1]} : vector<18x22xf32> to vector<16x22xf32>
    %44 = arith.addf %42, %43 : vector<16x22xf32>
    %45 = vector.extract_strided_slice %41 {offsets = [2, 0], sizes = [16, 22], strides = [1, 1]} : vector<18x22xf32> to vector<16x22xf32>
    %46 = arith.addf %44, %45 : vector<16x22xf32>
    %47 = vector.extract_strided_slice %9 {offsets = [0, 0], sizes = [18, 22], strides = [1, 1]} : vector<18x24xf32> to vector<18x22xf32>
    %48 = vector.extract_strided_slice %9 {offsets = [0, 1], sizes = [18, 22], strides = [1, 1]} : vector<18x24xf32> to vector<18x22xf32>
    %49 = arith.addf %47, %48 : vector<18x22xf32>
    %50 = vector.extract_strided_slice %9 {offsets = [0, 2], sizes = [18, 22], strides = [1, 1]} : vector<18x24xf32> to vector<18x22xf32>
    %51 = arith.addf %49, %50 : vector<18x22xf32>
    %52 = vector.extract_strided_slice %51 {offsets = [0, 0], sizes = [16, 22], strides = [1, 1]} : vector<18x22xf32> to vector<16x22xf32>
    %53 = vector.extract_strided_slice %51 {offsets = [1, 0], sizes = [16, 22], strides = [1, 1]} : vector<18x22xf32> to vector<16x22xf32>
    %54 = arith.addf %52, %53 : vector<16x22xf32>
    %55 = vector.extract_strided_slice %51 {offsets = [2, 0], sizes = [16, 22], strides = [1, 1]} : vector<18x22xf32> to vector<16x22xf32>
    %56 = arith.addf %54, %55 : vector<16x22xf32>
    %57 = arith.mulf %46, %46 : vector<16x22xf32>
    %cst_14 = arith.constant 0.027777778 : f32
    %58 = vector.broadcast %cst_14 : f32 to vector<16x22xf32>
    %59 = arith.mulf %57, %58 : vector<16x22xf32>
    %60 = arith.subf %56, %59 : vector<16x22xf32>
    %cst_15 = arith.constant 0.000000e+00 : f32
    %61 = vector.broadcast %cst_15 : f32 to vector<16x22xf32>
    %62 = arith.maximumf %60, %61 : vector<16x22xf32>
    %63 = math.sqrt %62 : vector<16x22xf32>
    %64 = vector.extract_strided_slice %3 {offsets = [0, 0, 0], sizes = [4, 18, 18], strides = [1, 1, 1]} : vector<4x18x24xf32> to vector<4x18x18xf32>
    %65 = arith.mulf %1, %64 : vector<4x18x18xf32>
    %cst_16 = arith.constant dense<0.000000e+00> : vector<18x18xf32>
    %66 = vector.multi_reduction <add>, %65, %cst_16 [0] : vector<4x18x18xf32> to vector<18x18xf32>
    %67 = vector.extract_strided_slice %66 {offsets = [0, 0], sizes = [18, 16], strides = [1, 1]} : vector<18x18xf32> to vector<18x16xf32>
    %68 = vector.extract_strided_slice %66 {offsets = [0, 1], sizes = [18, 16], strides = [1, 1]} : vector<18x18xf32> to vector<18x16xf32>
    %69 = arith.addf %67, %68 : vector<18x16xf32>
    %70 = vector.extract_strided_slice %66 {offsets = [0, 2], sizes = [18, 16], strides = [1, 1]} : vector<18x18xf32> to vector<18x16xf32>
    %71 = arith.addf %69, %70 : vector<18x16xf32>
    %72 = vector.extract_strided_slice %71 {offsets = [0, 0], sizes = [16, 16], strides = [1, 1]} : vector<18x16xf32> to vector<16x16xf32>
    %73 = vector.extract_strided_slice %71 {offsets = [1, 0], sizes = [16, 16], strides = [1, 1]} : vector<18x16xf32> to vector<16x16xf32>
    %74 = arith.addf %72, %73 : vector<16x16xf32>
    %75 = vector.extract_strided_slice %71 {offsets = [2, 0], sizes = [16, 16], strides = [1, 1]} : vector<18x16xf32> to vector<16x16xf32>
    %76 = arith.addf %74, %75 : vector<16x16xf32>
    %77 = vector.extract_strided_slice %46 {offsets = [0, 0], sizes = [16, 16], strides = [1, 1]} : vector<16x22xf32> to vector<16x16xf32>
    %78 = vector.extract_strided_slice %63 {offsets = [0, 0], sizes = [16, 16], strides = [1, 1]} : vector<16x22xf32> to vector<16x16xf32>
    %79 = arith.mulf %19, %77 : vector<16x16xf32>
    %cst_17 = arith.constant 0.027777778 : f32
    %80 = vector.broadcast %cst_17 : f32 to vector<16x16xf32>
    %81 = arith.mulf %79, %80 : vector<16x16xf32>
    %82 = arith.subf %76, %81 : vector<16x16xf32>
    %83 = arith.mulf %36, %78 : vector<16x16xf32>
    %cst_18 = arith.constant 9.99999993E-9 : f32
    %84 = vector.broadcast %cst_18 : f32 to vector<16x16xf32>
    %85 = arith.addf %83, %84 : vector<16x16xf32>
    %86 = tpu.reciprocal %85 {approx = true} : vector<16x16xf32> -> vector<16x16xf32>
    %87 = arith.mulf %82, %86 : vector<16x16xf32>
    %c0_19 = arith.constant 0 : index
    %c0_20 = arith.constant 0 : index
    %c0_21 = arith.constant 0 : index
    %c0_22 = arith.constant 0 : index
    %88 = vector.load %arg4[%c0_19, %c0_20, %c0_21, %c0_22] : memref<1x7x16x16xf32, #tpu.memory_space<vmem>>, vector<1x1x16x16xf32>
    %89 = vector.shape_cast %88 : vector<1x1x16x16xf32> to vector<16x16xf32>
    %90 = vector.shape_cast %87 : vector<16x16xf32> to vector<1x1x16x16xf32>
    tpu.vector_store %arg4[%c0_19, %c0_20, %c0_21, %c0_22], %90 {strides = array<i32>} : memref<1x7x16x16xf32, #tpu.memory_space<vmem>>, vector<1x1x16x16xf32>,
    %91 = vector.extract_strided_slice %3 {offsets = [0, 0, 1], sizes = [4, 18, 18], strides = [1, 1, 1]} : vector<4x18x24xf32> to vector<4x18x18xf32>
    %92 = arith.mulf %1, %91 : vector<4x18x18xf32>
    %cst_23 = arith.constant dense<0.000000e+00> : vector<18x18xf32>
    %93 = vector.multi_reduction <add>, %92, %cst_23 [0] : vector<4x18x18xf32> to vector<18x18xf32>
    %94 = vector.extract_strided_slice %93 {offsets = [0, 0], sizes = [18, 16], strides = [1, 1]} : vector<18x18xf32> to vector<18x16xf32>
    %95 = vector.extract_strided_slice %93 {offsets = [0, 1], sizes = [18, 16], strides = [1, 1]} : vector<18x18xf32> to vector<18x16xf32>
    %96 = arith.addf %94, %95 : vector<18x16xf32>
    %97 = vector.extract_strided_slice %93 {offsets = [0, 2], sizes = [18, 16], strides = [1, 1]} : vector<18x18xf32> to vector<18x16xf32>
    %98 = arith.addf %96, %97 : vector<18x16xf32>
    %99 = vector.extract_strided_slice %98 {offsets = [0, 0], sizes = [16, 16], strides = [1, 1]} : vector<18x16xf32> to vector<16x16xf32>
    %100 = vector.extract_strided_slice %98 {offsets = [1, 0], sizes = [16, 16], strides = [1, 1]} : vector<18x16xf32> to vector<16x16xf32>
    %101 = arith.addf %99, %100 : vector<16x16xf32>
    %102 = vector.extract_strided_slice %98 {offsets = [2, 0], sizes = [16, 16], strides = [1, 1]} : vector<18x16xf32> to vector<16x16xf32>
    %103 = arith.addf %101, %102 : vector<16x16xf32>
    %104 = vector.extract_strided_slice %46 {offsets = [0, 1], sizes = [16, 16], strides = [1, 1]} : vector<16x22xf32> to vector<16x16xf32>
    %105 = vector.extract_strided_slice %63 {offsets = [0, 1], sizes = [16, 16], strides = [1, 1]} : vector<16x22xf32> to vector<16x16xf32>
    %106 = arith.mulf %19, %104 : vector<16x16xf32>
    %cst_24 = arith.constant 0.027777778 : f32
    %107 = vector.broadcast %cst_24 : f32 to vector<16x16xf32>
    %108 = arith.mulf %106, %107 : vector<16x16xf32>
    %109 = arith.subf %103, %108 : vector<16x16xf32>
    %110 = arith.mulf %36, %105 : vector<16x16xf32>
    %cst_25 = arith.constant 9.99999993E-9 : f32
    %111 = vector.broadcast %cst_25 : f32 to vector<16x16xf32>
    %112 = arith.addf %110, %111 : vector<16x16xf32>
    %113 = tpu.reciprocal %112 {approx = true} : vector<16x16xf32> -> vector<16x16xf32>
    %114 = arith.mulf %109, %113 : vector<16x16xf32>
    %c0_26 = arith.constant 0 : index
    %c1 = arith.constant 1 : index
    %c0_27 = arith.constant 0 : index
    %c0_28 = arith.constant 0 : index
    %115 = vector.load %arg4[%c0_26, %c1, %c0_27, %c0_28] : memref<1x7x16x16xf32, #tpu.memory_space<vmem>>, vector<1x1x16x16xf32>
    %116 = vector.shape_cast %115 : vector<1x1x16x16xf32> to vector<16x16xf32>
    %117 = vector.shape_cast %114 : vector<16x16xf32> to vector<1x1x16x16xf32>
    tpu.vector_store %arg4[%c0_26, %c1, %c0_27, %c0_28], %117 {strides = array<i32>} : memref<1x7x16x16xf32, #tpu.memory_space<vmem>>, vector<1x1x16x16xf32>,
    %118 = vector.extract_strided_slice %3 {offsets = [0, 0, 2], sizes = [4, 18, 18], strides = [1, 1, 1]} : vector<4x18x24xf32> to vector<4x18x18xf32>
    %119 = arith.mulf %1, %118 : vector<4x18x18xf32>
    %cst_29 = arith.constant dense<0.000000e+00> : vector<18x18xf32>
    %120 = vector.multi_reduction <add>, %119, %cst_29 [0] : vector<4x18x18xf32> to vector<18x18xf32>
    %121 = vector.extract_strided_slice %120 {offsets = [0, 0], sizes = [18, 16], strides = [1, 1]} : vector<18x18xf32> to vector<18x16xf32>
    %122 = vector.extract_strided_slice %120 {offsets = [0, 1], sizes = [18, 16], strides = [1, 1]} : vector<18x18xf32> to vector<18x16xf32>
    %123 = arith.addf %121, %122 : vector<18x16xf32>
    %124 = vector.extract_strided_slice %120 {offsets = [0, 2], sizes = [18, 16], strides = [1, 1]} : vector<18x18xf32> to vector<18x16xf32>
    %125 = arith.addf %123, %124 : vector<18x16xf32>
    %126 = vector.extract_strided_slice %125 {offsets = [0, 0], sizes = [16, 16], strides = [1, 1]} : vector<18x16xf32> to vector<16x16xf32>
    %127 = vector.extract_strided_slice %125 {offsets = [1, 0], sizes = [16, 16], strides = [1, 1]} : vector<18x16xf32> to vector<16x16xf32>
    %128 = arith.addf %126, %127 : vector<16x16xf32>
    %129 = vector.extract_strided_slice %125 {offsets = [2, 0], sizes = [16, 16], strides = [1, 1]} : vector<18x16xf32> to vector<16x16xf32>
    %130 = arith.addf %128, %129 : vector<16x16xf32>
    %131 = vector.extract_strided_slice %46 {offsets = [0, 2], sizes = [16, 16], strides = [1, 1]} : vector<16x22xf32> to vector<16x16xf32>
    %132 = vector.extract_strided_slice %63 {offsets = [0, 2], sizes = [16, 16], strides = [1, 1]} : vector<16x22xf32> to vector<16x16xf32>
    %133 = arith.mulf %19, %131 : vector<16x16xf32>
    %cst_30 = arith.constant 0.027777778 : f32
    %134 = vector.broadcast %cst_30 : f32 to vector<16x16xf32>
    %135 = arith.mulf %133, %134 : vector<16x16xf32>
    %136 = arith.subf %130, %135 : vector<16x16xf32>
    %137 = arith.mulf %36, %132 : vector<16x16xf32>
    %cst_31 = arith.constant 9.99999993E-9 : f32
    %138 = vector.broadcast %cst_31 : f32 to vector<16x16xf32>
    %139 = arith.addf %137, %138 : vector<16x16xf32>
    %140 = tpu.reciprocal %139 {approx = true} : vector<16x16xf32> -> vector<16x16xf32>
    %141 = arith.mulf %136, %140 : vector<16x16xf32>
    %c0_32 = arith.constant 0 : index
    %c2 = arith.constant 2 : index
    %c0_33 = arith.constant 0 : index
    %c0_34 = arith.constant 0 : index
    %142 = vector.load %arg4[%c0_32, %c2, %c0_33, %c0_34] : memref<1x7x16x16xf32, #tpu.memory_space<vmem>>, vector<1x1x16x16xf32>
    %143 = vector.shape_cast %142 : vector<1x1x16x16xf32> to vector<16x16xf32>
    %144 = vector.shape_cast %141 : vector<16x16xf32> to vector<1x1x16x16xf32>
    tpu.vector_store %arg4[%c0_32, %c2, %c0_33, %c0_34], %144 {strides = array<i32>} : memref<1x7x16x16xf32, #tpu.memory_space<vmem>>, vector<1x1x16x16xf32>,
    %145 = vector.extract_strided_slice %3 {offsets = [0, 0, 3], sizes = [4, 18, 18], strides = [1, 1, 1]} : vector<4x18x24xf32> to vector<4x18x18xf32>
    %146 = arith.mulf %1, %145 : vector<4x18x18xf32>
    %cst_35 = arith.constant dense<0.000000e+00> : vector<18x18xf32>
    %147 = vector.multi_reduction <add>, %146, %cst_35 [0] : vector<4x18x18xf32> to vector<18x18xf32>
    %148 = vector.extract_strided_slice %147 {offsets = [0, 0], sizes = [18, 16], strides = [1, 1]} : vector<18x18xf32> to vector<18x16xf32>
    %149 = vector.extract_strided_slice %147 {offsets = [0, 1], sizes = [18, 16], strides = [1, 1]} : vector<18x18xf32> to vector<18x16xf32>
    %150 = arith.addf %148, %149 : vector<18x16xf32>
    %151 = vector.extract_strided_slice %147 {offsets = [0, 2], sizes = [18, 16], strides = [1, 1]} : vector<18x18xf32> to vector<18x16xf32>
    %152 = arith.addf %150, %151 : vector<18x16xf32>
    %153 = vector.extract_strided_slice %152 {offsets = [0, 0], sizes = [16, 16], strides = [1, 1]} : vector<18x16xf32> to vector<16x16xf32>
    %154 = vector.extract_strided_slice %152 {offsets = [1, 0], sizes = [16, 16], strides = [1, 1]} : vector<18x16xf32> to vector<16x16xf32>
    %155 = arith.addf %153, %154 : vector<16x16xf32>
    %156 = vector.extract_strided_slice %152 {offsets = [2, 0], sizes = [16, 16], strides = [1, 1]} : vector<18x16xf32> to vector<16x16xf32>
    %157 = arith.addf %155, %156 : vector<16x16xf32>
    %158 = vector.extract_strided_slice %46 {offsets = [0, 3], sizes = [16, 16], strides = [1, 1]} : vector<16x22xf32> to vector<16x16xf32>
    %159 = vector.extract_strided_slice %63 {offsets = [0, 3], sizes = [16, 16], strides = [1, 1]} : vector<16x22xf32> to vector<16x16xf32>
    %160 = arith.mulf %19, %158 : vector<16x16xf32>
    %cst_36 = arith.constant 0.027777778 : f32
    %161 = vector.broadcast %cst_36 : f32 to vector<16x16xf32>
    %162 = arith.mulf %160, %161 : vector<16x16xf32>
    %163 = arith.subf %157, %162 : vector<16x16xf32>
    %164 = arith.mulf %36, %159 : vector<16x16xf32>
    %cst_37 = arith.constant 9.99999993E-9 : f32
    %165 = vector.broadcast %cst_37 : f32 to vector<16x16xf32>
    %166 = arith.addf %164, %165 : vector<16x16xf32>
    %167 = tpu.reciprocal %166 {approx = true} : vector<16x16xf32> -> vector<16x16xf32>
    %168 = arith.mulf %163, %167 : vector<16x16xf32>
    %c0_38 = arith.constant 0 : index
    %c3 = arith.constant 3 : index
    %c0_39 = arith.constant 0 : index
    %c0_40 = arith.constant 0 : index
    %169 = vector.load %arg4[%c0_38, %c3, %c0_39, %c0_40] : memref<1x7x16x16xf32, #tpu.memory_space<vmem>>, vector<1x1x16x16xf32>
    %170 = vector.shape_cast %169 : vector<1x1x16x16xf32> to vector<16x16xf32>
    %171 = vector.shape_cast %168 : vector<16x16xf32> to vector<1x1x16x16xf32>
    tpu.vector_store %arg4[%c0_38, %c3, %c0_39, %c0_40], %171 {strides = array<i32>} : memref<1x7x16x16xf32, #tpu.memory_space<vmem>>, vector<1x1x16x16xf32>,
    %172 = vector.extract_strided_slice %3 {offsets = [0, 0, 4], sizes = [4, 18, 18], strides = [1, 1, 1]} : vector<4x18x24xf32> to vector<4x18x18xf32>
    %173 = arith.mulf %1, %172 : vector<4x18x18xf32>
    %cst_41 = arith.constant dense<0.000000e+00> : vector<18x18xf32>
    %174 = vector.multi_reduction <add>, %173, %cst_41 [0] : vector<4x18x18xf32> to vector<18x18xf32>
    %175 = vector.extract_strided_slice %174 {offsets = [0, 0], sizes = [18, 16], strides = [1, 1]} : vector<18x18xf32> to vector<18x16xf32>
    %176 = vector.extract_strided_slice %174 {offsets = [0, 1], sizes = [18, 16], strides = [1, 1]} : vector<18x18xf32> to vector<18x16xf32>
    %177 = arith.addf %175, %176 : vector<18x16xf32>
    %178 = vector.extract_strided_slice %174 {offsets = [0, 2], sizes = [18, 16], strides = [1, 1]} : vector<18x18xf32> to vector<18x16xf32>
    %179 = arith.addf %177, %178 : vector<18x16xf32>
    %180 = vector.extract_strided_slice %179 {offsets = [0, 0], sizes = [16, 16], strides = [1, 1]} : vector<18x16xf32> to vector<16x16xf32>
    %181 = vector.extract_strided_slice %179 {offsets = [1, 0], sizes = [16, 16], strides = [1, 1]} : vector<18x16xf32> to vector<16x16xf32>
    %182 = arith.addf %180, %181 : vector<16x16xf32>
    %183 = vector.extract_strided_slice %179 {offsets = [2, 0], sizes = [16, 16], strides = [1, 1]} : vector<18x16xf32> to vector<16x16xf32>
    %184 = arith.addf %182, %183 : vector<16x16xf32>
    %185 = vector.extract_strided_slice %46 {offsets = [0, 4], sizes = [16, 16], strides = [1, 1]} : vector<16x22xf32> to vector<16x16xf32>
    %186 = vector.extract_strided_slice %63 {offsets = [0, 4], sizes = [16, 16], strides = [1, 1]} : vector<16x22xf32> to vector<16x16xf32>
    %187 = arith.mulf %19, %185 : vector<16x16xf32>
    %cst_42 = arith.constant 0.027777778 : f32
    %188 = vector.broadcast %cst_42 : f32 to vector<16x16xf32>
    %189 = arith.mulf %187, %188 : vector<16x16xf32>
    %190 = arith.subf %184, %189 : vector<16x16xf32>
    %191 = arith.mulf %36, %186 : vector<16x16xf32>
    %cst_43 = arith.constant 9.99999993E-9 : f32
    %192 = vector.broadcast %cst_43 : f32 to vector<16x16xf32>
    %193 = arith.addf %191, %192 : vector<16x16xf32>
    %194 = tpu.reciprocal %193 {approx = true} : vector<16x16xf32> -> vector<16x16xf32>
    %195 = arith.mulf %190, %194 : vector<16x16xf32>
    %c0_44 = arith.constant 0 : index
    %c4 = arith.constant 4 : index
    %c0_45 = arith.constant 0 : index
    %c0_46 = arith.constant 0 : index
    %196 = vector.load %arg4[%c0_44, %c4, %c0_45, %c0_46] : memref<1x7x16x16xf32, #tpu.memory_space<vmem>>, vector<1x1x16x16xf32>
    %197 = vector.shape_cast %196 : vector<1x1x16x16xf32> to vector<16x16xf32>
    %198 = vector.shape_cast %195 : vector<16x16xf32> to vector<1x1x16x16xf32>
    tpu.vector_store %arg4[%c0_44, %c4, %c0_45, %c0_46], %198 {strides = array<i32>} : memref<1x7x16x16xf32, #tpu.memory_space<vmem>>, vector<1x1x16x16xf32>,
    %199 = vector.extract_strided_slice %3 {offsets = [0, 0, 5], sizes = [4, 18, 18], strides = [1, 1, 1]} : vector<4x18x24xf32> to vector<4x18x18xf32>
    %200 = arith.mulf %1, %199 : vector<4x18x18xf32>
    %cst_47 = arith.constant dense<0.000000e+00> : vector<18x18xf32>
    %201 = vector.multi_reduction <add>, %200, %cst_47 [0] : vector<4x18x18xf32> to vector<18x18xf32>
    %202 = vector.extract_strided_slice %201 {offsets = [0, 0], sizes = [18, 16], strides = [1, 1]} : vector<18x18xf32> to vector<18x16xf32>
    %203 = vector.extract_strided_slice %201 {offsets = [0, 1], sizes = [18, 16], strides = [1, 1]} : vector<18x18xf32> to vector<18x16xf32>
    %204 = arith.addf %202, %203 : vector<18x16xf32>
    %205 = vector.extract_strided_slice %201 {offsets = [0, 2], sizes = [18, 16], strides = [1, 1]} : vector<18x18xf32> to vector<18x16xf32>
    %206 = arith.addf %204, %205 : vector<18x16xf32>
    %207 = vector.extract_strided_slice %206 {offsets = [0, 0], sizes = [16, 16], strides = [1, 1]} : vector<18x16xf32> to vector<16x16xf32>
    %208 = vector.extract_strided_slice %206 {offsets = [1, 0], sizes = [16, 16], strides = [1, 1]} : vector<18x16xf32> to vector<16x16xf32>
    %209 = arith.addf %207, %208 : vector<16x16xf32>
    %210 = vector.extract_strided_slice %206 {offsets = [2, 0], sizes = [16, 16], strides = [1, 1]} : vector<18x16xf32> to vector<16x16xf32>
    %211 = arith.addf %209, %210 : vector<16x16xf32>
    %212 = vector.extract_strided_slice %46 {offsets = [0, 5], sizes = [16, 16], strides = [1, 1]} : vector<16x22xf32> to vector<16x16xf32>
    %213 = vector.extract_strided_slice %63 {offsets = [0, 5], sizes = [16, 16], strides = [1, 1]} : vector<16x22xf32> to vector<16x16xf32>
    %214 = arith.mulf %19, %212 : vector<16x16xf32>
    %cst_48 = arith.constant 0.027777778 : f32
    %215 = vector.broadcast %cst_48 : f32 to vector<16x16xf32>
    %216 = arith.mulf %214, %215 : vector<16x16xf32>
    %217 = arith.subf %211, %216 : vector<16x16xf32>
    %218 = arith.mulf %36, %213 : vector<16x16xf32>
    %cst_49 = arith.constant 9.99999993E-9 : f32
    %219 = vector.broadcast %cst_49 : f32 to vector<16x16xf32>
    %220 = arith.addf %218, %219 : vector<16x16xf32>
    %221 = tpu.reciprocal %220 {approx = true} : vector<16x16xf32> -> vector<16x16xf32>
    %222 = arith.mulf %217, %221 : vector<16x16xf32>
    %c0_50 = arith.constant 0 : index
    %c5 = arith.constant 5 : index
    %c0_51 = arith.constant 0 : index
    %c0_52 = arith.constant 0 : index
    %223 = vector.load %arg4[%c0_50, %c5, %c0_51, %c0_52] : memref<1x7x16x16xf32, #tpu.memory_space<vmem>>, vector<1x1x16x16xf32>
    %224 = vector.shape_cast %223 : vector<1x1x16x16xf32> to vector<16x16xf32>
    %225 = vector.shape_cast %222 : vector<16x16xf32> to vector<1x1x16x16xf32>
    tpu.vector_store %arg4[%c0_50, %c5, %c0_51, %c0_52], %225 {strides = array<i32>} : memref<1x7x16x16xf32, #tpu.memory_space<vmem>>, vector<1x1x16x16xf32>,
    %226 = vector.extract_strided_slice %3 {offsets = [0, 0, 6], sizes = [4, 18, 18], strides = [1, 1, 1]} : vector<4x18x24xf32> to vector<4x18x18xf32>
    %227 = arith.mulf %1, %226 : vector<4x18x18xf32>
    %cst_53 = arith.constant dense<0.000000e+00> : vector<18x18xf32>
    %228 = vector.multi_reduction <add>, %227, %cst_53 [0] : vector<4x18x18xf32> to vector<18x18xf32>
    %229 = vector.extract_strided_slice %228 {offsets = [0, 0], sizes = [18, 16], strides = [1, 1]} : vector<18x18xf32> to vector<18x16xf32>
    %230 = vector.extract_strided_slice %228 {offsets = [0, 1], sizes = [18, 16], strides = [1, 1]} : vector<18x18xf32> to vector<18x16xf32>
    %231 = arith.addf %229, %230 : vector<18x16xf32>
    %232 = vector.extract_strided_slice %228 {offsets = [0, 2], sizes = [18, 16], strides = [1, 1]} : vector<18x18xf32> to vector<18x16xf32>
    %233 = arith.addf %231, %232 : vector<18x16xf32>
    %234 = vector.extract_strided_slice %233 {offsets = [0, 0], sizes = [16, 16], strides = [1, 1]} : vector<18x16xf32> to vector<16x16xf32>
    %235 = vector.extract_strided_slice %233 {offsets = [1, 0], sizes = [16, 16], strides = [1, 1]} : vector<18x16xf32> to vector<16x16xf32>
    %236 = arith.addf %234, %235 : vector<16x16xf32>
    %237 = vector.extract_strided_slice %233 {offsets = [2, 0], sizes = [16, 16], strides = [1, 1]} : vector<18x16xf32> to vector<16x16xf32>
    %238 = arith.addf %236, %237 : vector<16x16xf32>
    %239 = vector.extract_strided_slice %46 {offsets = [0, 6], sizes = [16, 16], strides = [1, 1]} : vector<16x22xf32> to vector<16x16xf32>
    %240 = vector.extract_strided_slice %63 {offsets = [0, 6], sizes = [16, 16], strides = [1, 1]} : vector<16x22xf32> to vector<16x16xf32>
    %241 = arith.mulf %19, %239 : vector<16x16xf32>
    %cst_54 = arith.constant 0.027777778 : f32
    %242 = vector.broadcast %cst_54 : f32 to vector<16x16xf32>
    %243 = arith.mulf %241, %242 : vector<16x16xf32>
    %244 = arith.subf %238, %243 : vector<16x16xf32>
    %245 = arith.mulf %36, %240 : vector<16x16xf32>
    %cst_55 = arith.constant 9.99999993E-9 : f32
    %246 = vector.broadcast %cst_55 : f32 to vector<16x16xf32>
    %247 = arith.addf %245, %246 : vector<16x16xf32>
    %248 = tpu.reciprocal %247 {approx = true} : vector<16x16xf32> -> vector<16x16xf32>
    %249 = arith.mulf %244, %248 : vector<16x16xf32>
    %c0_56 = arith.constant 0 : index
    %c6 = arith.constant 6 : index
    %c0_57 = arith.constant 0 : index
    %c0_58 = arith.constant 0 : index
    %250 = vector.load %arg4[%c0_56, %c6, %c0_57, %c0_58] : memref<1x7x16x16xf32, #tpu.memory_space<vmem>>, vector<1x1x16x16xf32>
    %251 = vector.shape_cast %250 : vector<1x1x16x16xf32> to vector<16x16xf32>
    %252 = vector.shape_cast %249 : vector<16x16xf32> to vector<1x1x16x16xf32>
    tpu.vector_store %arg4[%c0_56, %c6, %c0_57, %c0_58], %252 {strides = array<i32>} : memref<1x7x16x16xf32, #tpu.memory_space<vmem>>, vector<1x1x16x16xf32>,
    return
  }
  func.func @transform_0(%arg0: i32, %arg1: i32) -> (i32, i32, i32, i32, i32) {
    %c0_i32 = arith.constant 0 : i32
    %c0_i32_0 = arith.constant 0 : i32
    %c0_i32_1 = arith.constant 0 : i32
    %c0_i32_2 = arith.constant 0 : i32
    return %arg0, %arg1, %c0_i32, %c0_i32_0, %c0_i32_1 : i32, i32, i32, i32, i32
  }
  func.func @transform_1(%arg0: i32, %arg1: i32) -> (i32, i32, i32, i32, i32) {
    %c0_i32 = arith.constant 0 : i32
    %c0_i32_0 = arith.constant 0 : i32
    %c0_i32_1 = arith.constant 0 : i32
    %c0_i32_2 = arith.constant 0 : i32
    return %arg0, %arg1, %c0_i32, %c0_i32_0, %c0_i32_1 : i32, i32, i32, i32, i32
  }
  func.func @transform_2(%arg0: i32, %arg1: i32) -> (i32, i32, i32, i32) {
    %c0_i32 = arith.constant 0 : i32
    %c0_i32_0 = arith.constant 0 : i32
    %c0_i32_1 = arith.constant 0 : i32
    return %arg0, %c0_i32, %arg1, %c0_i32_0 : i32, i32, i32, i32
  }
}

</mosaic_0001>

<llo_original>
// kernel: tpu_custom_call.1
$region0: #{tpu_custom_call.1}
  #allocation0 [shape = 'u32[]', space=smem, size = 0x4, offset = 0x4, fixed_abs, tag = 'smem constant byte address 0x4 - core index']
  #allocation1 [shape = 'u32[72,128]{1,0:T(1,128)}', space=vmem, size = 0x9000, scoped, tag = 'internal scratch']
  %s0 = inlined_call_operand.vmem [shape: f32[2,1,4,18,18], index: 0, kind: input, shape index: {}]
  %s1 = inlined_call_operand.vmem [shape: f32[2,1,4,18,24], index: 1, kind: input, shape index: {}]
  %s2 = inlined_call_operand.hbm [shape: f32[2,7,16,16], index: 2, kind: output, shape index: {}]
  %s3 = sld [smem:[#allocation0]]
  $region41: #{tpu_custom_call.1} parent=0
    _
  %s5 = ssub.s32 1, %s3
  %s6 = scalar_select 0, %s5, %s3
  $region1: #{tpu_custom_call.1} parent=0
    #allocation2 [shape = 'u8[114688]{0}', space=vmem, size = 0x1c000, scoped, tag = 'output window, operand 0']
    #allocation3 [shape = 's32[2]{0}', space=sflag, size = 0x8, scoped, tag = 'scoped memory for tpu_custom_call.1']
    %7 = vsyncpa [#allocation3], 0
    %s8 = scalar_lea.sflag [#allocation3], 1
    %9 = vsyncpa %s8, 0
    loop: start=0, step=1, limit=4
    $region2: #{tpu_custom_call.1} parent=1 // loop_pre_header
      _
    $region3: #{tpu_custom_call.1} parent=1 // loop_header
      %s11 = sphi 0, %s15
      %p12 = scmp.ge.s32.totalorder %s11, 4
      %s18 = sphi 0, %s30
      %s19 = sphi 0, %s26
      %s20 = sphi 0, %s18
      %s21 = sphi 0, %s19
      %s22 = sphi 0, %s20
      %s23 = sphi 0, %s21
      %s35 = sphi 0, %s37
      %s38 = sphi 0, %s35
      %s39 = sphi 0, %s38
      %s55 = sphi 0, %s39
      %s63 = sphi 0, %s65
      %s66 = sphi 0, %s63
      %s67 = sphi 0, %s66
      %s83 = sphi 0, %s67
      %s91 = sphi 0, %s93
      %s94 = sphi 0, %s91
      %s95 = sphi 0, %s94
      %s111 = sphi 0, %s95
    $region4: #{tpu_custom_call.1} parent=1 // loop_header_branch
      %14 = sbr.rel (%p12) target = $region8
    $region5: #{tpu_custom_call.1} parent=1 // loop_body
      %s16 = ssub.s32 %s11, 1
      %s17 = ssub.s32 %s11, 2
      %s24 = sadd.s32 1, %s19
      %p25 = scmp.ge.s32.totalorder %s24, 1
      %s26 = scalar_select %p25, 0, %s24
      %s27 = sadd.s32 1, %s18
      %s28 = scalar_select %p25, %s27, %s18
      %p29 = scmp.ge.s32.totalorder %s28, 2
      %s30 = scalar_select %p29, 0, %s28
      %s31 = ssub.s32 %s18, %s30
      %s32 = ssub.s32 %s19, %s26
      %s33 = sor.u32 %s31, %s32
      %p34 = scmp.eq.s32.totalorder %s33, 0
      %s36 = sadd.s32 %s35, 1
      %s37 = scalar_select %p34, %s35, %s36
      %p40 = pneg %p34
      %p41 = scmp.eq.s32.totalorder %s11, 1
      %p42 = por %p40, %p41
      %p43 = scmp.ne.s32.totalorder %s35, %s38
      %p44 = scmp.eq.s32.totalorder %s11, 0
      %p45 = por %p43, %p44
      %p46 = scmp.ne.s32.totalorder %s35, %s38
      %p47 = scmp.eq.s32.totalorder %s16, 1
      %p48 = por %p46, %p47
      %p49 = scmp.ne.s32.totalorder %s38, %s39
      %p50 = scmp.eq.s32.totalorder %s16, 0
      %p51 = por %p49, %p50
      %p52 = scmp.ne.s32.totalorder %s38, %s39
      %p53 = scmp.eq.s32.totalorder %s17, 1
      %p54 = por %p52, %p53
      %p56 = scmp.ne.s32.totalorder %s39, %s55
      %p57 = scmp.eq.s32.totalorder %s17, 0
      %p58 = por %p56, %p57
      %s59 = ssub.s32 %s18, %s30
      %s60 = ssub.s32 %s19, %s26
      %s61 = sor.u32 %s59, %s60
      %p62 = scmp.eq.s32.totalorder %s61, 0
      %s64 = sadd.s32 %s63, 1
      %s65 = scalar_select %p62, %s63, %s64
      %p68 = pneg %p62
      %p69 = scmp.eq.s32.totalorder %s11, 1
      %p70 = por %p68, %p69
      %p71 = scmp.ne.s32.totalorder %s63, %s66
      %p72 = scmp.eq.s32.totalorder %s11, 0
      %p73 = por %p71, %p72
      %p74 = scmp.ne.s32.totalorder %s63, %s66
      %p75 = scmp.eq.s32.totalorder %s16, 1
      %p76 = por %p74, %p75
      %p77 = scmp.ne.s32.totalorder %s66, %s67
      %p78 = scmp.eq.s32.totalorder %s16, 0
      %p79 = por %p77, %p78
      %p80 = scmp.ne.s32.totalorder %s66, %s67
      %p81 = scmp.eq.s32.totalorder %s17, 1
      %p82 = por %p80, %p81
      %p84 = scmp.ne.s32.totalorder %s67, %s83
      %p85 = scmp.eq.s32.totalorder %s17, 0
      %p86 = por %p84, %p85
      %s87 = ssub.s32 %s18, %s30
      %s88 = ssub.s32 %s19, %s26
      %s89 = sor.u32 %s87, %s88
      %p90 = scmp.eq.s32.totalorder %s89, 0
      %s92 = sadd.s32 %s91, 1
      %s93 = scalar_select %p90, %s91, %s92
      %p96 = pneg %p90
      %p97 = scmp.eq.s32.totalorder %s11, 1
      %p98 = por %p96, %p97
      %p99 = scmp.ne.s32.totalorder %s91, %s94
      %p100 = scmp.eq.s32.totalorder %s11, 0
      %p101 = por %p99, %p100
      %p102 = scmp.ne.s32.totalorder %s91, %s94
      %p103 = scmp.eq.s32.totalorder %s16, 1
      %p104 = por %p102, %p103
      %p105 = scmp.ne.s32.totalorder %s94, %s95
      %p106 = scmp.eq.s32.totalorder %s16, 0
      %p107 = por %p105, %p106
      %p108 = scmp.ne.s32.totalorder %s94, %s95
      %p109 = scmp.eq.s32.totalorder %s17, 1
      %p110 = por %p108, %p109
      %p112 = scmp.ne.s32.totalorder %s95, %s111
      %p113 = scmp.eq.s32.totalorder %s17, 0
      %p114 = por %p112, %p113
      %p115 = scmp.le.s32.totalorder 1, %s11
      %p116 = scmp.lt.s32.totalorder %s11, 3
      %p117 = pnand %p115, %p116
      %p118 = pneg %p117
      // Predicated region
      $region9: #{tpu_custom_call.1} parent=5 // pred_check
        _
      $region10: #{tpu_custom_call.1} parent=5 // pred_check_branch
        %120 = sbr.rel (%p117) target = $region12
      $region11: #{tpu_custom_call.1} parent=5 // pred_region
        %s121 = ssub.s32 %s11, 1
      $region12: #{tpu_custom_call.1} parent=5 // pred_fallthru
        _
      %p122 = scmp.lt.s32.totalorder %s11, 2
      // Predicated region
      $region13: #{tpu_custom_call.1} parent=5 // pred_check
        %p123 = pneg %p122
      $region14: #{tpu_custom_call.1} parent=5 // pred_check_branch
        %125 = sbr.rel (%p123) target = $region16
      $region15: #{tpu_custom_call.1} parent=5 // pred_region
        // Predicated region
        $region17: #{tpu_custom_call.1} parent=15 // pred_check
          %p126 = pneg %p45
        $region18: #{tpu_custom_call.1} parent=15 // pred_check_branch
          %128 = sbr.rel (%p126) target = $region20
        $region19: #{tpu_custom_call.1} parent=15 // pred_region
          %p129 = scmp.lt.s32.totalorder %s18, 1
          %s130 = scalar_select %p129, %s18, 1
          %p131 = scmp.lt.s32.totalorder %s19, 0
          %s132 = scalar_select %p131, %s19, 0
          %s133 = smul.addr %s132, 12
          %s134 = smul.addr %s130, 12
          %s135 = sadd.s32 %s133, %s134
          %s136 = smul.addr %s135, 8
          %s137 = scalar_lea.vmem %s0, %s136
        $region20: #{tpu_custom_call.1} parent=15 // pred_fallthru
          _
        // Predicated region
        $region21: #{tpu_custom_call.1} parent=15 // pred_check
          %p138 = pneg %p73
        $region22: #{tpu_custom_call.1} parent=15 // pred_check_branch
          %140 = sbr.rel (%p138) target = $region24
        $region23: #{tpu_custom_call.1} parent=15 // pred_region
          %p141 = scmp.lt.s32.totalorder %s18, 1
          %s142 = scalar_select %p141, %s18, 1
          %p143 = scmp.lt.s32.totalorder %s19, 0
          %s144 = scalar_select %p143, %s19, 0
          %s145 = smul.addr %s144, 12
          %s146 = smul.addr %s142, 12
          %s147 = sadd.s32 %s145, %s146
          %s148 = smul.addr %s147, 8
          %s149 = scalar_lea.vmem %s1, %s148
        $region24: #{tpu_custom_call.1} parent=15 // pred_fallthru
          _
      $region16: #{tpu_custom_call.1} parent=5 // pred_fallthru
        _
      %p150 = scmp.le.s32.totalorder 1, %s11
      %p151 = scmp.lt.s32.totalorder %s11, 3
      %p152 = pnand %p150, %p151
      %p153 = pneg %p152
      // Predicated region
      $region25: #{tpu_custom_call.1} parent=5 // pred_check
        _
      $region26: #{tpu_custom_call.1} parent=5 // pred_check_branch
        %155 = sbr.rel (%p152) target = $region28
      $region27: #{tpu_custom_call.1} parent=5 // pred_region
        %s156 = ssub.s32 %s11, 1
        %p157 = scmp.lt.s32.totalorder %s20, 1
        %s158 = scalar_select %p157, %s20, 1
        %p159 = scmp.lt.s32.totalorder %s21, 0
        %s160 = scalar_select %p159, %s21, 0
        %s161 = smul.addr %s160, 12
        %s162 = smul.addr %s158, 12
        %s163 = sadd.s32 %s161, %s162
        %s164 = smul.addr %s163, 8
        %s165 = scalar_lea.vmem %s0, %s164
        %p166 = pneg %p51
        %p167 = pneg %p48
        %p168 = scmp.lt.s32.totalorder %s20, 1
        %s169 = scalar_select %p168, %s20, 1
        %p170 = scmp.lt.s32.totalorder %s21, 0
        %s171 = scalar_select %p170, %s21, 0
        %s172 = smul.addr %s171, 12
        %s173 = smul.addr %s169, 12
        %s174 = sadd.s32 %s172, %s173
        %s175 = smul.addr %s174, 8
        %s176 = scalar_lea.vmem %s1, %s175
        %p177 = pneg %p79
        %p178 = pneg %p76
        %p179 = pneg %p107
        %p180 = pneg %p104
        %s181 = sand.u32 %s94, 1
        %s182 = scalar_lea.sflag [#allocation3], %s181
        %s183 = sand.u32 %s94, 1
        %s184 = smul.addr %s183, 112
        %s185 = scalar_lea.vmem [#allocation2], %s184
        %p186 = scmp.lt.s32.totalorder %s20, 1
        %s187 = scalar_select %p186, %s20, 1
        %p188 = scmp.lt.s32.totalorder %s21, 0
        %s189 = scalar_select %p188, %s21, 0
        %s190 = smul.addr %s189, 12
        %s191 = smul.addr %s187, 12
        %s192 = sadd.s32 %s190, %s191
        %s193 = smul.addr %s192, 8
        %s194 = scalar_lea.vmem %s0, %s193
        %p195 = scmp.lt.s32.totalorder %s20, 1
        %s196 = scalar_select %p195, %s20, 1
        %p197 = scmp.lt.s32.totalorder %s21, 0
        %s198 = scalar_select %p197, %s21, 0
        %s199 = smul.addr %s198, 12
        %s200 = smul.addr %s196, 12
        %s201 = sadd.s32 %s199, %s200
        %s202 = smul.addr %s201, 8
        %s203 = scalar_lea.vmem %s1, %s202
        %s204 = smul.u32 2, %s21
        %v205 = vld [vmem:[%s194] sm:$0xff]
        %v206 = vld [vmem:[%s194 + $0x8] sm:$0xff]
        %v207 = vld [vmem:[%s194 + $0x10] sm:$0x3]
        %v208 = vld [vmem:[%s194 + $0x18] sm:$0xff]
        %v209 = vld [vmem:[%s194 + $0x20] sm:$0xff]
        %v210 = vld [vmem:[%s194 + $0x28] sm:$0x3]
        %v211 = vld [vmem:[%s194 + $0x30] sm:$0xff]
        %v212 = vld [vmem:[%s194 + $0x38] sm:$0xff]
        %v213 = vld [vmem:[%s194 + $0x40] sm:$0x3]
        %v214 = vld [vmem:[%s194 + $0x48] sm:$0xff]
        %v215 = vld [vmem:[%s194 + $0x50] sm:$0xff]
        %v216 = vld [vmem:[%s194 + $0x58] sm:$0x3]
        %v217 = vld [vmem:[%s203] sm:$0xff]
        %v218 = vld [vmem:[%s203 + $0x8] sm:$0xff]
        %v219 = vld [vmem:[%s203 + $0x10] sm:$0x3]
        %v220 = vld [vmem:[%s203 + $0x18] sm:$0xff]
        %v221 = vld [vmem:[%s203 + $0x20] sm:$0xff]
        %v222 = vld [vmem:[%s203 + $0x28] sm:$0x3]
        %v223 = vld [vmem:[%s203 + $0x30] sm:$0xff]
        %v224 = vld [vmem:[%s203 + $0x38] sm:$0xff]
        %v225 = vld [vmem:[%s203 + $0x40] sm:$0x3]
        %v226 = vld [vmem:[%s203 + $0x48] sm:$0xff]
        %v227 = vld [vmem:[%s203 + $0x50] sm:$0xff]
        %v228 = vld [vmem:[%s203 + $0x58] sm:$0x3]
        %vm229 = vcmask 146432
        %v230 = vsel %vm229, %v205, 0.0
        %v231 = vsel %vm229, %v208, 0.0
        %v232 = vadd.f32 %v230, %v231
        %v233 = vsel %vm229, %v211, 0.0
        %v234 = vadd.f32 %v232, %v233
        %v235 = vsel %vm229, %v214, 0.0
        %v236 = vadd.f32 %v234, %v235
        %v237 = vsel %vm229, %v206, 0.0
        %v238 = vsel %vm229, %v209, 0.0
        %v239 = vadd.f32 %v237, %v238
        %v240 = vsel %vm229, %v212, 0.0
        %v241 = vadd.f32 %v239, %v240
        %v242 = vsel %vm229, %v215, 0.0
        %v243 = vadd.f32 %v241, %v242
        %vm244 = vcmask 140288
        %v245 = vsel %vm244, %v207, 0.0
        %v246 = vsel %vm244, %v210, 0.0
        %v247 = vadd.f32 %v245, %v246
        %v248 = vsel %vm244, %v213, 0.0
        %v249 = vadd.f32 %v247, %v248
        %v250 = vsel %vm244, %v216, 0.0
        %v251 = vadd.f32 %v249, %v250
        %v252 = vmul.f32 %v205, %v205
        %v253 = vmul.f32 %v206, %v206
        %v254 = vmul.f32 %v207, %v207
        %v255 = vmul.f32 %v208, %v208
        %v256 = vmul.f32 %v209, %v209
        %v257 = vmul.f32 %v210, %v210
        %v258 = vmul.f32 %v211, %v211
        %v259 = vmul.f32 %v212, %v212
        %v260 = vmul.f32 %v213, %v213
        %v261 = vmul.f32 %v214, %v214
        %v262 = vmul.f32 %v215, %v215
        %v263 = vmul.f32 %v216, %v216
        %v264 = vsel %vm229, %v252, 0.0
        %v265 = vsel %vm229, %v255, 0.0
        %v266 = vadd.f32 %v264, %v265
        %v267 = vsel %vm229, %v258, 0.0
        %v268 = vadd.f32 %v266, %v267
        %v269 = vsel %vm229, %v261, 0.0
        %v270 = vadd.f32 %v268, %v269
        %v271 = vsel %vm229, %v253, 0.0
        %v272 = vsel %vm229, %v256, 0.0
        %v273 = vadd.f32 %v271, %v272
        %v274 = vsel %vm229, %v259, 0.0
        %v275 = vadd.f32 %v273, %v274
        %v276 = vsel %vm229, %v262, 0.0
        %v277 = vadd.f32 %v275, %v276
        %v278 = vsel %vm244, %v254, 0.0
        %v279 = vsel %vm244, %v257, 0.0
        %v280 = vadd.f32 %v278, %v279
        %v281 = vsel %vm244, %v260, 0.0
        %v282 = vadd.f32 %v280, %v281
        %v283 = vsel %vm244, %v263, 0.0
        %v284 = vadd.f32 %v282, %v283
        %vm285 = vcmask 195584
        %v286 = vsel %vm285, %v217, 0.0
        %v287 = vsel %vm285, %v220, 0.0
        %v288 = vadd.f32 %v286, %v287
        %v289 = vsel %vm285, %v223, 0.0
        %v290 = vadd.f32 %v288, %v289
        %v291 = vsel %vm285, %v226, 0.0
        %v292 = vadd.f32 %v290, %v291
        %v293 = vsel %vm285, %v218, 0.0
        %v294 = vsel %vm285, %v221, 0.0
        %v295 = vadd.f32 %v293, %v294
        %v296 = vsel %vm285, %v224, 0.0
        %v297 = vadd.f32 %v295, %v296
        %v298 = vsel %vm285, %v227, 0.0
        %v299 = vadd.f32 %v297, %v298
        %vm300 = vcmask 189440
        %v301 = vsel %vm300, %v219, 0.0
        %v302 = vsel %vm300, %v222, 0.0
        %v303 = vadd.f32 %v301, %v302
        %v304 = vsel %vm300, %v225, 0.0
        %v305 = vadd.f32 %v303, %v304
        %v306 = vsel %vm300, %v228, 0.0
        %v307 = vadd.f32 %v305, %v306
        %v308 = vmul.f32 %v217, %v217
        %v309 = vmul.f32 %v218, %v218
        %v310 = vmul.f32 %v219, %v219
        %v311 = vmul.f32 %v220, %v220
        %v312 = vmul.f32 %v221, %v221
        %v313 = vmul.f32 %v222, %v222
        %v314 = vmul.f32 %v223, %v223
        %v315 = vmul.f32 %v224, %v224
        %v316 = vmul.f32 %v225, %v225
        %v317 = vmul.f32 %v226, %v226
        %v318 = vmul.f32 %v227, %v227
        %v319 = vmul.f32 %v228, %v228
        %v320 = vsel %vm285, %v308, 0.0
        %v321 = vsel %vm285, %v311, 0.0
        %v322 = vadd.f32 %v320, %v321
        %v323 = vsel %vm285, %v314, 0.0
        %v324 = vadd.f32 %v322, %v323
        %v325 = vsel %vm285, %v317, 0.0
        %v326 = vadd.f32 %v324, %v325
        %v327 = vsel %vm285, %v309, 0.0
        %v328 = vsel %vm285, %v312, 0.0
        %v329 = vadd.f32 %v327, %v328
        %v330 = vsel %vm285, %v315, 0.0
        %v331 = vadd.f32 %v329, %v330
        %v332 = vsel %vm285, %v318, 0.0
        %v333 = vadd.f32 %v331, %v332
        %v334 = vsel %vm300, %v310, 0.0
        %v335 = vsel %vm300, %v313, 0.0
        %v336 = vadd.f32 %v334, %v335
        %v337 = vsel %vm300, %v316, 0.0
        %v338 = vadd.f32 %v336, %v337
        %v339 = vsel %vm300, %v319, 0.0
        %v340 = vadd.f32 %v338, %v339
        %344 = vrot.lane.b32.xlu0 %v236, 127
        %v345 = vpop.permute.xlu0 %344
        %346 = vrot.lane.b32.xlu0 %v243, 127
        %v347 = vpop.permute.xlu0 %346
        %348 = vrot.lane.b32.xlu0 %v251, 127
        %v349 = vpop.permute.xlu0 %348
        %v353 = vadd.f32 %v236, %v345
        %v354 = vadd.f32 %v243, %v347
        %v355 = vadd.f32 %v251, %v349
        %356 = vrot.lane.b32.xlu0 %v236, 126
        %v357 = vpop.permute.xlu0 %356
        %358 = vrot.lane.b32.xlu0 %v243, 126
        %v359 = vpop.permute.xlu0 %358
        %360 = vrot.lane.b32.xlu0 %v251, 126
        %v361 = vpop.permute.xlu0 %360
        %v365 = vadd.f32 %v353, %v357
        %v366 = vadd.f32 %v354, %v359
        %v367 = vadd.f32 %v355, %v361
        %vm371 = vcmask 1046528
        %v372 = vrot.slane %v365, 1
        %v373 = vrot.slane %v366, 1
        %v374 = vsel %vm371, %v372, %v373
        %v375 = vrot.slane %v367, 1
        %v376 = vsel %vm371, %v373, %v375
        %v379 = vadd.f32 %v365, %v374
        %v380 = vadd.f32 %v366, %v376
        %vm381 = vcmask 1045504
        %v382 = vrot.slane %v365, 2
        %v383 = vrot.slane %v366, 2
        %v384 = vsel %vm381, %v382, %v383
        %v385 = vrot.slane %v367, 2
        %v386 = vsel %vm381, %v383, %v385
        %v389 = vadd.f32 %v379, %v384
        %v390 = vadd.f32 %v380, %v386
        %394 = vrot.lane.b32.xlu0 %v270, 127
        %v395 = vpop.permute.xlu0 %394
        %396 = vrot.lane.b32.xlu0 %v277, 127
        %v397 = vpop.permute.xlu0 %396
        %398 = vrot.lane.b32.xlu0 %v284, 127
        %v399 = vpop.permute.xlu0 %398
        %v403 = vadd.f32 %v270, %v395
        %v404 = vadd.f32 %v277, %v397
        %v405 = vadd.f32 %v284, %v399
        %406 = vrot.lane.b32.xlu0 %v270, 126
        %v407 = vpop.permute.xlu0 %406
        %408 = vrot.lane.b32.xlu0 %v277, 126
        %v409 = vpop.permute.xlu0 %408
        %410 = vrot.lane.b32.xlu0 %v284, 126
        %v411 = vpop.permute.xlu0 %410
        %v415 = vadd.f32 %v403, %v407
        %v416 = vadd.f32 %v404, %v409
        %v417 = vadd.f32 %v405, %v411
        %v421 = vrot.slane %v415, 1
        %v422 = vrot.slane %v416, 1
        %v423 = vsel %vm371, %v421, %v422
        %v424 = vrot.slane %v417, 1
        %v425 = vsel %vm371, %v422, %v424
        %v428 = vadd.f32 %v415, %v423
        %v429 = vadd.f32 %v416, %v425
        %v430 = vrot.slane %v415, 2
        %v431 = vrot.slane %v416, 2
        %v432 = vsel %vm381, %v430, %v431
        %v433 = vrot.slane %v417, 2
        %v434 = vsel %vm381, %v431, %v433
        %v437 = vadd.f32 %v428, %v432
        %v438 = vadd.f32 %v429, %v434
        %v439 = vmul.f32 %v389, %v389
        %v440 = vmul.f32 %v390, %v390
        %v441 = vmul.f32 %v439, 0.027777778
        %v442 = vmul.f32 %v440, 0.027777778
        %v443 = vsub.f32 %v437, %v441
        %v444 = vsub.f32 %v438, %v442
        %v445 = vmax.f32 %v443, 0.0
        %v446 = vmax.f32 %v444, 0.0
        %v447 = vrsqrt.pop %v445
        %v448 = vmul.f32 %v447, %v445
        %v449 = vmul.f32 %v448, %v447
        %v450 = vmul.f32 0.5, %v449
        %v451 = vsub.f32 1.5, %v450
        %v452 = vmul.f32 %v447, %v451
        %v453 = vmul.f32 %v445, %v452
        %vm454 = vcmp.eq.f32.partialorder %v445, inf
        %v455 = vsel %vm454, %v445, %v453
        %vm456 = vcmp.eq.f32.partialorder %v445, 0.0
        %v457 = vand.u32 %v445, 2147483648
        %v458 = vsel %vm456, %v457, %v455
        %v459 = vrsqrt.pop %v446
        %v460 = vmul.f32 %v459, %v446
        %v461 = vmul.f32 %v460, %v459
        %v462 = vmul.f32 0.5, %v461
        %v463 = vsub.f32 1.5, %v462
        %v464 = vmul.f32 %v459, %v463
        %v465 = vmul.f32 %v446, %v464
        %vm466 = vcmp.eq.f32.partialorder %v446, inf
        %v467 = vsel %vm466, %v446, %v465
        %vm468 = vcmp.eq.f32.partialorder %v446, 0.0
        %v469 = vand.u32 %v446, 2147483648
        %v470 = vsel %vm468, %v469, %v467
        %474 = vrot.lane.b32.xlu0 %v292, 127
        %v475 = vpop.permute.xlu0 %474
        %476 = vrot.lane.b32.xlu0 %v299, 127
        %v477 = vpop.permute.xlu0 %476
        %478 = vrot.lane.b32.xlu0 %v307, 127
        %v479 = vpop.permute.xlu0 %478
        %v483 = vadd.f32 %v292, %v475
        %v484 = vadd.f32 %v299, %v477
        %v485 = vadd.f32 %v307, %v479
        %486 = vrot.lane.b32.xlu0 %v292, 126
        %v487 = vpop.permute.xlu0 %486
        %488 = vrot.lane.b32.xlu0 %v299, 126
        %v489 = vpop.permute.xlu0 %488
        %490 = vrot.lane.b32.xlu0 %v307, 126
        %v491 = vpop.permute.xlu0 %490
        %v495 = vadd.f32 %v483, %v487
        %v496 = vadd.f32 %v484, %v489
        %v497 = vadd.f32 %v485, %v491
        %v501 = vrot.slane %v495, 1
        %v502 = vrot.slane %v496, 1
        %v503 = vsel %vm371, %v501, %v502
        %v504 = vrot.slane %v497, 1
        %v505 = vsel %vm371, %v502, %v504
        %v508 = vadd.f32 %v495, %v503
        %v509 = vadd.f32 %v496, %v505
        %v510 = vrot.slane %v495, 2
        %v511 = vrot.slane %v496, 2
        %v512 = vsel %vm381, %v510, %v511
        %v513 = vrot.slane %v497, 2
        %v514 = vsel %vm381, %v511, %v513
        %v517 = vadd.f32 %v508, %v512
        %v518 = vadd.f32 %v509, %v514
        %522 = vrot.lane.b32.xlu0 %v326, 127
        %v523 = vpop.permute.xlu0 %522
        %524 = vrot.lane.b32.xlu0 %v333, 127
        %v525 = vpop.permute.xlu0 %524
        %526 = vrot.lane.b32.xlu0 %v340, 127
        %v527 = vpop.permute.xlu0 %526
        %v531 = vadd.f32 %v326, %v523
        %v532 = vadd.f32 %v333, %v525
        %v533 = vadd.f32 %v340, %v527
        %534 = vrot.lane.b32.xlu0 %v326, 126
        %v535 = vpop.permute.xlu0 %534
        %536 = vrot.lane.b32.xlu0 %v333, 126
        %v537 = vpop.permute.xlu0 %536
        %538 = vrot.lane.b32.xlu0 %v340, 126
        %v539 = vpop.permute.xlu0 %538
        %v543 = vadd.f32 %v531, %v535
        %v544 = vadd.f32 %v532, %v537
        %v545 = vadd.f32 %v533, %v539
        %v549 = vrot.slane %v543, 1
        %v550 = vrot.slane %v544, 1
        %v551 = vsel %vm371, %v549, %v550
        %v552 = vrot.slane %v545, 1
        %v553 = vsel %vm371, %v550, %v552
        %v556 = vadd.f32 %v543, %v551
        %v557 = vadd.f32 %v544, %v553
        %v558 = vrot.slane %v543, 2
        %v559 = vrot.slane %v544, 2
        %v560 = vsel %vm381, %v558, %v559
        %v561 = vrot.slane %v545, 2
        %v562 = vsel %vm381, %v559, %v561
        %v565 = vadd.f32 %v556, %v560
        %v566 = vadd.f32 %v557, %v562
        %v567 = vmul.f32 %v517, %v517
        %v568 = vmul.f32 %v518, %v518
        %v569 = vmul.f32 %v567, 0.027777778
        %v570 = vmul.f32 %v568, 0.027777778
        %v571 = vsub.f32 %v565, %v569
        %v572 = vsub.f32 %v566, %v570
        %v573 = vmax.f32 %v571, 0.0
        %v574 = vmax.f32 %v572, 0.0
        %v575 = vrsqrt.pop %v573
        %v576 = vmul.f32 %v575, %v573
        %v577 = vmul.f32 %v576, %v575
        %v578 = vmul.f32 0.5, %v577
        %v579 = vsub.f32 1.5, %v578
        %v580 = vmul.f32 %v575, %v579
        %v581 = vmul.f32 %v573, %v580
        %vm582 = vcmp.eq.f32.partialorder %v573, inf
        %v583 = vsel %vm582, %v573, %v581
        %vm584 = vcmp.eq.f32.partialorder %v573, 0.0
        %v585 = vand.u32 %v573, 2147483648
        %v586 = vsel %vm584, %v585, %v583
        %v587 = vrsqrt.pop %v574
        %v588 = vmul.f32 %v587, %v574
        %v589 = vmul.f32 %v588, %v587
        %v590 = vmul.f32 0.5, %v589
        %v591 = vsub.f32 1.5, %v590
        %v592 = vmul.f32 %v587, %v591
        %v593 = vmul.f32 %v574, %v592
        %vm594 = vcmp.eq.f32.partialorder %v574, inf
        %v595 = vsel %vm594, %v574, %v593
        %vm596 = vcmp.eq.f32.partialorder %v574, 0.0
        %v597 = vand.u32 %v574, 2147483648
        %v598 = vsel %vm596, %v597, %v595
        %v599 = vmul.f32 %v205, %v217
        %v600 = vmul.f32 %v206, %v218
        %v601 = vmul.f32 %v207, %v219
        %v602 = vmul.f32 %v208, %v220
        %v603 = vmul.f32 %v209, %v221
        %v604 = vmul.f32 %v210, %v222
        %v605 = vmul.f32 %v211, %v223
        %v606 = vmul.f32 %v212, %v224
        %v607 = vmul.f32 %v213, %v225
        %v608 = vmul.f32 %v214, %v226
        %v609 = vmul.f32 %v215, %v227
        %v610 = vmul.f32 %v216, %v228
        %v611 = vsel %vm229, %v599, 0.0
        %v612 = vsel %vm229, %v602, 0.0
        %v613 = vadd.f32 %v611, %v612
        %v614 = vsel %vm229, %v605, 0.0
        %v615 = vadd.f32 %v613, %v614
        %v616 = vsel %vm229, %v608, 0.0
        %v617 = vadd.f32 %v615, %v616
        %v618 = vsel %vm229, %v600, 0.0
        %v619 = vsel %vm229, %v603, 0.0
        %v620 = vadd.f32 %v618, %v619
        %v621 = vsel %vm229, %v606, 0.0
        %v622 = vadd.f32 %v620, %v621
        %v623 = vsel %vm229, %v609, 0.0
        %v624 = vadd.f32 %v622, %v623
        %v625 = vsel %vm244, %v601, 0.0
        %v626 = vsel %vm244, %v604, 0.0
        %v627 = vadd.f32 %v625, %v626
        %v628 = vsel %vm244, %v607, 0.0
        %v629 = vadd.f32 %v627, %v628
        %v630 = vsel %vm244, %v610, 0.0
        %v631 = vadd.f32 %v629, %v630
        %635 = vrot.lane.b32.xlu0 %v617, 127
        %v636 = vpop.permute.xlu0 %635
        %637 = vrot.lane.b32.xlu0 %v624, 127
        %v638 = vpop.permute.xlu0 %637
        %639 = vrot.lane.b32.xlu0 %v631, 127
        %v640 = vpop.permute.xlu0 %639
        %v644 = vadd.f32 %v617, %v636
        %v645 = vadd.f32 %v624, %v638
        %v646 = vadd.f32 %v631, %v640
        %647 = vrot.lane.b32.xlu0 %v617, 126
        %v648 = vpop.permute.xlu0 %647
        %649 = vrot.lane.b32.xlu0 %v624, 126
        %v650 = vpop.permute.xlu0 %649
        %651 = vrot.lane.b32.xlu0 %v631, 126
        %v652 = vpop.permute.xlu0 %651
        %v656 = vadd.f32 %v644, %v648
        %v657 = vadd.f32 %v645, %v650
        %v658 = vadd.f32 %v646, %v652
        %v662 = vrot.slane %v656, 1
        %v663 = vrot.slane %v657, 1
        %v664 = vsel %vm371, %v662, %v663
        %v665 = vrot.slane %v658, 1
        %v666 = vsel %vm371, %v663, %v665
        %v669 = vadd.f32 %v656, %v664
        %v670 = vadd.f32 %v657, %v666
        %v671 = vrot.slane %v656, 2
        %v672 = vrot.slane %v657, 2
        %v673 = vsel %vm381, %v671, %v672
        %v674 = vrot.slane %v658, 2
        %v675 = vsel %vm381, %v672, %v674
        %v678 = vadd.f32 %v669, %v673
        %v679 = vadd.f32 %v670, %v675
        %v680 = vmul.f32 %v389, %v517
        %v681 = vmul.f32 %v390, %v518
        %v682 = vmul.f32 %v680, 0.027777778
        %v683 = vmul.f32 %v681, 0.027777778
        %v684 = vsub.f32 %v678, %v682
        %v685 = vsub.f32 %v679, %v683
        %v686 = vmul.f32 %v458, %v586
        %v687 = vmul.f32 %v470, %v598
        %v688 = vadd.f32 %v686, 1e-08
        %v689 = vadd.f32 %v687, 1e-08
        %v690 = vrcp.pop %v688
        %v691 = vrcp.pop %v689
        %v692 = vmul.f32 %v684, %v690
        %v693 = vmul.f32 %v685, %v691
        %vm694 = vcmask 130048
        %695 = vst.msk [vmem:[%s185] sm:$0xff] %vm694, %v692
        %696 = vst.msk [vmem:[%s185 + $0x8] sm:$0xff] %vm694, %v693
        %709 = vrot.lane.b32.xlu0 %v217, 127
        %v710 = vpop.permute.xlu0 %709
        %711 = vrot.lane.b32.xlu0 %v218, 127
        %v712 = vpop.permute.xlu0 %711
        %713 = vrot.lane.b32.xlu0 %v219, 127
        %v714 = vpop.permute.xlu0 %713
        %715 = vrot.lane.b32.xlu0 %v220, 127
        %v716 = vpop.permute.xlu0 %715
        %717 = vrot.lane.b32.xlu0 %v221, 127
        %v718 = vpop.permute.xlu0 %717
        %719 = vrot.lane.b32.xlu0 %v222, 127
        %v720 = vpop.permute.xlu0 %719
        %721 = vrot.lane.b32.xlu0 %v223, 127
        %v722 = vpop.permute.xlu0 %721
        %723 = vrot.lane.b32.xlu0 %v224, 127
        %v724 = vpop.permute.xlu0 %723
        %725 = vrot.lane.b32.xlu0 %v225, 127
        %v726 = vpop.permute.xlu0 %725
        %727 = vrot.lane.b32.xlu0 %v226, 127
        %v728 = vpop.permute.xlu0 %727
        %729 = vrot.lane.b32.xlu0 %v227, 127
        %v730 = vpop.permute.xlu0 %729
        %731 = vrot.lane.b32.xlu0 %v228, 127
        %v732 = vpop.permute.xlu0 %731
        %v745 = vmul.f32 %v205, %v710
        %v746 = vmul.f32 %v206, %v712
        %v747 = vmul.f32 %v207, %v714
        %v748 = vmul.f32 %v208, %v716
        %v749 = vmul.f32 %v209, %v718
        %v750 = vmul.f32 %v210, %v720
        %v751 = vmul.f32 %v211, %v722
        %v752 = vmul.f32 %v212, %v724
        %v753 = vmul.f32 %v213, %v726
        %v754 = vmul.f32 %v214, %v728
        %v755 = vmul.f32 %v215, %v730
        %v756 = vmul.f32 %v216, %v732
        %v757 = vsel %vm229, %v745, 0.0
        %v758 = vsel %vm229, %v748, 0.0
        %v759 = vadd.f32 %v757, %v758
        %v760 = vsel %vm229, %v751, 0.0
        %v761 = vadd.f32 %v759, %v760
        %v762 = vsel %vm229, %v754, 0.0
        %v763 = vadd.f32 %v761, %v762
        %v764 = vsel %vm229, %v746, 0.0
        %v765 = vsel %vm229, %v749, 0.0
        %v766 = vadd.f32 %v764, %v765
        %v767 = vsel %vm229, %v752, 0.0
        %v768 = vadd.f32 %v766, %v767
        %v769 = vsel %vm229, %v755, 0.0
        %v770 = vadd.f32 %v768, %v769
        %v771 = vsel %vm244, %v747, 0.0
        %v772 = vsel %vm244, %v750, 0.0
        %v773 = vadd.f32 %v771, %v772
        %v774 = vsel %vm244, %v753, 0.0
        %v775 = vadd.f32 %v773, %v774
        %v776 = vsel %vm244, %v756, 0.0
        %v777 = vadd.f32 %v775, %v776
        %781 = vrot.lane.b32.xlu0 %v763, 127
        %v782 = vpop.permute.xlu0 %781
        %783 = vrot.lane.b32.xlu0 %v770, 127
        %v784 = vpop.permute.xlu0 %783
        %785 = vrot.lane.b32.xlu0 %v777, 127
        %v786 = vpop.permute.xlu0 %785
        %v790 = vadd.f32 %v763, %v782
        %v791 = vadd.f32 %v770, %v784
        %v792 = vadd.f32 %v777, %v786
        %793 = vrot.lane.b32.xlu0 %v763, 126
        %v794 = vpop.permute.xlu0 %793
        %795 = vrot.lane.b32.xlu0 %v770, 126
        %v796 = vpop.permute.xlu0 %795
        %797 = vrot.lane.b32.xlu0 %v777, 126
        %v798 = vpop.permute.xlu0 %797
        %v802 = vadd.f32 %v790, %v794
        %v803 = vadd.f32 %v791, %v796
        %v804 = vadd.f32 %v792, %v798
        %v808 = vrot.slane %v802, 1
        %v809 = vrot.slane %v803, 1
        %v810 = vsel %vm371, %v808, %v809
        %v811 = vrot.slane %v804, 1
        %v812 = vsel %vm371, %v809, %v811
        %v815 = vadd.f32 %v802, %v810
        %v816 = vadd.f32 %v803, %v812
        %v817 = vrot.slane %v802, 2
        %v818 = vrot.slane %v803, 2
        %v819 = vsel %vm381, %v817, %v818
        %v820 = vrot.slane %v804, 2
        %v821 = vsel %vm381, %v818, %v820
        %v824 = vadd.f32 %v815, %v819
        %v825 = vadd.f32 %v816, %v821
        %828 = vrot.lane.b32.xlu0 %v517, 127
        %v829 = vpop.permute.xlu0 %828
        %830 = vrot.lane.b32.xlu0 %v518, 127
        %v831 = vpop.permute.xlu0 %830
        %v834 = vmul.f32 %v389, %v829
        %v835 = vmul.f32 %v390, %v831
        %v836 = vmul.f32 %v834, 0.027777778
        %v837 = vmul.f32 %v835, 0.027777778
        %v838 = vsub.f32 %v824, %v836
        %v839 = vsub.f32 %v825, %v837
        %842 = vrot.lane.b32.xlu0 %v586, 127
        %v843 = vpop.permute.xlu0 %842
        %844 = vrot.lane.b32.xlu0 %v598, 127
        %v845 = vpop.permute.xlu0 %844
        %v848 = vmul.f32 %v458, %v843
        %v849 = vmul.f32 %v470, %v845
        %v850 = vadd.f32 %v848, 1e-08
        %v851 = vadd.f32 %v849, 1e-08
        %v852 = vrcp.pop %v850
        %v853 = vrcp.pop %v851
        %v854 = vmul.f32 %v838, %v852
        %v855 = vmul.f32 %v839, %v853
        %s856 = scalar_lea.vmem %s185, 16 [#allocation2]
        %857 = vst.msk [vmem:[%s856] sm:$0xff] %vm694, %v854
        %858 = vst.msk [vmem:[%s856 + $0x8] sm:$0xff] %vm694, %v855
        %859 = vrot.lane.b32.xlu0 %v217, 126
        %v860 = vpop.permute.xlu0 %859
        %861 = vrot.lane.b32.xlu0 %v218, 126
        %v862 = vpop.permute.xlu0 %861
        %863 = vrot.lane.b32.xlu0 %v219, 126
        %v864 = vpop.permute.xlu0 %863
        %865 = vrot.lane.b32.xlu0 %v220, 126
        %v866 = vpop.permute.xlu0 %865
        %867 = vrot.lane.b32.xlu0 %v221, 126
        %v868 = vpop.permute.xlu0 %867
        %869 = vrot.lane.b32.xlu0 %v222, 126
        %v870 = vpop.permute.xlu0 %869
        %871 = vrot.lane.b32.xlu0 %v223, 126
        %v872 = vpop.permute.xlu0 %871
        %873 = vrot.lane.b32.xlu0 %v224, 126
        %v874 = vpop.permute.xlu0 %873
        %875 = vrot.lane.b32.xlu0 %v225, 126
        %v876 = vpop.permute.xlu0 %875
        %877 = vrot.lane.b32.xlu0 %v226, 126
        %v878 = vpop.permute.xlu0 %877
        %879 = vrot.lane.b32.xlu0 %v227, 126
        %v880 = vpop.permute.xlu0 %879
        %881 = vrot.lane.b32.xlu0 %v228, 126
        %v882 = vpop.permute.xlu0 %881
        %v895 = vmul.f32 %v205, %v860
        %v896 = vmul.f32 %v206, %v862
        %v897 = vmul.f32 %v207, %v864
        %v898 = vmul.f32 %v208, %v866
        %v899 = vmul.f32 %v209, %v868
        %v900 = vmul.f32 %v210, %v870
        %v901 = vmul.f32 %v211, %v872
        %v902 = vmul.f32 %v212, %v874
        %v903 = vmul.f32 %v213, %v876
        %v904 = vmul.f32 %v214, %v878
        %v905 = vmul.f32 %v215, %v880
        %v906 = vmul.f32 %v216, %v882
        %v907 = vsel %vm229, %v895, 0.0
        %v908 = vsel %vm229, %v898, 0.0
        %v909 = vadd.f32 %v907, %v908
        %v910 = vsel %vm229, %v901, 0.0
        %v911 = vadd.f32 %v909, %v910
        %v912 = vsel %vm229, %v904, 0.0
        %v913 = vadd.f32 %v911, %v912
        %v914 = vsel %vm229, %v896, 0.0
        %v915 = vsel %vm229, %v899, 0.0
        %v916 = vadd.f32 %v914, %v915
        %v917 = vsel %vm229, %v902, 0.0
        %v918 = vadd.f32 %v916, %v917
        %v919 = vsel %vm229, %v905, 0.0
        %v920 = vadd.f32 %v918, %v919
        %v921 = vsel %vm244, %v897, 0.0
        %v922 = vsel %vm244, %v900, 0.0
        %v923 = vadd.f32 %v921, %v922
        %v924 = vsel %vm244, %v903, 0.0
        %v925 = vadd.f32 %v923, %v924
        %v926 = vsel %vm244, %v906, 0.0
        %v927 = vadd.f32 %v925, %v926
        %931 = vrot.lane.b32.xlu0 %v913, 127
        %v932 = vpop.permute.xlu0 %931
        %933 = vrot.lane.b32.xlu0 %v920, 127
        %v934 = vpop.permute.xlu0 %933
        %935 = vrot.lane.b32.xlu0 %v927, 127
        %v936 = vpop.permute.xlu0 %935
        %v940 = vadd.f32 %v913, %v932
        %v941 = vadd.f32 %v920, %v934
        %v942 = vadd.f32 %v927, %v936
        %943 = vrot.lane.b32.xlu0 %v913, 126
        %v944 = vpop.permute.xlu0 %943
        %945 = vrot.lane.b32.xlu0 %v920, 126
        %v946 = vpop.permute.xlu0 %945
        %947 = vrot.lane.b32.xlu0 %v927, 126
        %v948 = vpop.permute.xlu0 %947
        %v952 = vadd.f32 %v940, %v944
        %v953 = vadd.f32 %v941, %v946
        %v954 = vadd.f32 %v942, %v948
        %v958 = vrot.slane %v952, 1
        %v959 = vrot.slane %v953, 1
        %v960 = vsel %vm371, %v958, %v959
        %v961 = vrot.slane %v954, 1
        %v962 = vsel %vm371, %v959, %v961
        %v965 = vadd.f32 %v952, %v960
        %v966 = vadd.f32 %v953, %v962
        %v967 = vrot.slane %v952, 2
        %v968 = vrot.slane %v953, 2
        %v969 = vsel %vm381, %v967, %v968
        %v970 = vrot.slane %v954, 2
        %v971 = vsel %vm381, %v968, %v970
        %v974 = vadd.f32 %v965, %v969
        %v975 = vadd.f32 %v966, %v971
        %976 = vrot.lane.b32.xlu0 %v517, 126
        %v977 = vpop.permute.xlu0 %976
        %978 = vrot.lane.b32.xlu0 %v518, 126
        %v979 = vpop.permute.xlu0 %978
        %v982 = vmul.f32 %v389, %v977
        %v983 = vmul.f32 %v390, %v979
        %v984 = vmul.f32 %v982, 0.027777778
        %v985 = vmul.f32 %v983, 0.027777778
        %v986 = vsub.f32 %v974, %v984
        %v987 = vsub.f32 %v975, %v985
        %988 = vrot.lane.b32.xlu0 %v586, 126
        %v989 = vpop.permute.xlu0 %988
        %990 = vrot.lane.b32.xlu0 %v598, 126
        %v991 = vpop.permute.xlu0 %990
        %v994 = vmul.f32 %v458, %v989
        %v995 = vmul.f32 %v470, %v991
        %v996 = vadd.f32 %v994, 1e-08
        %v997 = vadd.f32 %v995, 1e-08
        %v998 = vrcp.pop %v996
        %v999 = vrcp.pop %v997
        %v1000 = vmul.f32 %v986, %v998
        %v1001 = vmul.f32 %v987, %v999
        %s1002 = scalar_lea.vmem %s185, 32 [#allocation2]
        %1003 = vst.msk [vmem:[%s1002] sm:$0xff] %vm694, %v1000
        %1004 = vst.msk [vmem:[%s1002 + $0x8] sm:$0xff] %vm694, %v1001
        %1005 = vrot.lane.b32.xlu0 %v217, 125
        %v1006 = vpop.permute.xlu0 %1005
        %1007 = vrot.lane.b32.xlu0 %v218, 125
        %v1008 = vpop.permute.xlu0 %1007
        %1009 = vrot.lane.b32.xlu0 %v219, 125
        %v1010 = vpop.permute.xlu0 %1009
        %1011 = vrot.lane.b32.xlu0 %v220, 125
        %v1012 = vpop.permute.xlu0 %1011
        %1013 = vrot.lane.b32.xlu0 %v221, 125
        %v1014 = vpop.permute.xlu0 %1013
        %1015 = vrot.lane.b32.xlu0 %v222, 125
        %v1016 = vpop.permute.xlu0 %1015
        %1017 = vrot.lane.b32.xlu0 %v223, 125
        %v1018 = vpop.permute.xlu0 %1017
        %1019 = vrot.lane.b32.xlu0 %v224, 125
        %v1020 = vpop.permute.xlu0 %1019
        %1021 = vrot.lane.b32.xlu0 %v225, 125
        %v1022 = vpop.permute.xlu0 %1021
        %1023 = vrot.lane.b32.xlu0 %v226, 125
        %v1024 = vpop.permute.xlu0 %1023
        %1025 = vrot.lane.b32.xlu0 %v227, 125
        %v1026 = vpop.permute.xlu0 %1025
        %1027 = vrot.lane.b32.xlu0 %v228, 125
        %v1028 = vpop.permute.xlu0 %1027
        %v1041 = vmul.f32 %v205, %v1006
        %v1042 = vmul.f32 %v206, %v1008
        %v1043 = vmul.f32 %v207, %v1010
        %v1044 = vmul.f32 %v208, %v1012
        %v1045 = vmul.f32 %v209, %v1014
        %v1046 = vmul.f32 %v210, %v1016
        %v1047 = vmul.f32 %v211, %v1018
        %v1048 = vmul.f32 %v212, %v1020
        %v1049 = vmul.f32 %v213, %v1022
        %v1050 = vmul.f32 %v214, %v1024
        %v1051 = vmul.f32 %v215, %v1026
        %v1052 = vmul.f32 %v216, %v1028
        %v1053 = vsel %vm229, %v1041, 0.0
        %v1054 = vsel %vm229, %v1044, 0.0
        %v1055 = vadd.f32 %v1053, %v1054
        %v1056 = vsel %vm229, %v1047, 0.0
        %v1057 = vadd.f32 %v1055, %v1056
        %v1058 = vsel %vm229, %v1050, 0.0
        %v1059 = vadd.f32 %v1057, %v1058
        %v1060 = vsel %vm229, %v1042, 0.0
        %v1061 = vsel %vm229, %v1045, 0.0
        %v1062 = vadd.f32 %v1060, %v1061
        %v1063 = vsel %vm229, %v1048, 0.0
        %v1064 = vadd.f32 %v1062, %v1063
        %v1065 = vsel %vm229, %v1051, 0.0
        %v1066 = vadd.f32 %v1064, %v1065
        %v1067 = vsel %vm244, %v1043, 0.0
        %v1068 = vsel %vm244, %v1046, 0.0
        %v1069 = vadd.f32 %v1067, %v1068
        %v1070 = vsel %vm244, %v1049, 0.0
        %v1071 = vadd.f32 %v1069, %v1070
        %v1072 = vsel %vm244, %v1052, 0.0
        %v1073 = vadd.f32 %v1071, %v1072
        %1077 = vrot.lane.b32.xlu0 %v1059, 127
        %v1078 = vpop.permute.xlu0 %1077
        %1079 = vrot.lane.b32.xlu0 %v1066, 127
        %v1080 = vpop.permute.xlu0 %1079
        %1081 = vrot.lane.b32.xlu0 %v1073, 127
        %v1082 = vpop.permute.xlu0 %1081
        %v1086 = vadd.f32 %v1059, %v1078
        %v1087 = vadd.f32 %v1066, %v1080
        %v1088 = vadd.f32 %v1073, %v1082
        %1089 = vrot.lane.b32.xlu0 %v1059, 126
        %v1090 = vpop.permute.xlu0 %1089
        %1091 = vrot.lane.b32.xlu0 %v1066, 126
        %v1092 = vpop.permute.xlu0 %1091
        %1093 = vrot.lane.b32.xlu0 %v1073, 126
        %v1094 = vpop.permute.xlu0 %1093
        %v1098 = vadd.f32 %v1086, %v1090
        %v1099 = vadd.f32 %v1087, %v1092
        %v1100 = vadd.f32 %v1088, %v1094
        %v1104 = vrot.slane %v1098, 1
        %v1105 = vrot.slane %v1099, 1
        %v1106 = vsel %vm371, %v1104, %v1105
        %v1107 = vrot.slane %v1100, 1
        %v1108 = vsel %vm371, %v1105, %v1107
        %v1111 = vadd.f32 %v1098, %v1106
        %v1112 = vadd.f32 %v1099, %v1108
        %v1113 = vrot.slane %v1098, 2
        %v1114 = vrot.slane %v1099, 2
        %v1115 = vsel %vm381, %v1113, %v1114
        %v1116 = vrot.slane %v1100, 2
        %v1117 = vsel %vm381, %v1114, %v1116
        %v1120 = vadd.f32 %v1111, %v1115
        %v1121 = vadd.f32 %v1112, %v1117
        %1122 = vrot.lane.b32.xlu0 %v517, 125
        %v1123 = vpop.permute.xlu0 %1122
        %1124 = vrot.lane.b32.xlu0 %v518, 125
        %v1125 = vpop.permute.xlu0 %1124
        %v1128 = vmul.f32 %v389, %v1123
        %v1129 = vmul.f32 %v390, %v1125
        %v1130 = vmul.f32 %v1128, 0.027777778
        %v1131 = vmul.f32 %v1129, 0.027777778
        %v1132 = vsub.f32 %v1120, %v1130
        %v1133 = vsub.f32 %v1121, %v1131
        %1134 = vrot.lane.b32.xlu0 %v586, 125
        %v1135 = vpop.permute.xlu0 %1134
        %1136 = vrot.lane.b32.xlu0 %v598, 125
        %v1137 = vpop.permute.xlu0 %1136
        %v1140 = vmul.f32 %v458, %v1135
        %v1141 = vmul.f32 %v470, %v1137
        %v1142 = vadd.f32 %v1140, 1e-08
        %v1143 = vadd.f32 %v1141, 1e-08
        %v1144 = vrcp.pop %v1142
        %v1145 = vrcp.pop %v1143
        %v1146 = vmul.f32 %v1132, %v1144
        %v1147 = vmul.f32 %v1133, %v1145
        %s1148 = scalar_lea.vmem %s185, 48 [#allocation2]
        %1149 = vst.msk [vmem:[%s1148] sm:$0xff] %vm694, %v1146
        %1150 = vst.msk [vmem:[%s1148 + $0x8] sm:$0xff] %vm694, %v1147
        %1151 = vrot.lane.b32.xlu0 %v217, 124
        %v1152 = vpop.permute.xlu0 %1151
        %1153 = vrot.lane.b32.xlu0 %v218, 124
        %v1154 = vpop.permute.xlu0 %1153
        %1155 = vrot.lane.b32.xlu0 %v219, 124
        %v1156 = vpop.permute.xlu0 %1155
        %1157 = vrot.lane.b32.xlu0 %v220, 124
        %v1158 = vpop.permute.xlu0 %1157
        %1159 = vrot.lane.b32.xlu0 %v221, 124
        %v1160 = vpop.permute.xlu0 %1159
        %1161 = vrot.lane.b32.xlu0 %v222, 124
        %v1162 = vpop.permute.xlu0 %1161
        %1163 = vrot.lane.b32.xlu0 %v223, 124
        %v1164 = vpop.permute.xlu0 %1163
        %1165 = vrot.lane.b32.xlu0 %v224, 124
        %v1166 = vpop.permute.xlu0 %1165
        %1167 = vrot.lane.b32.xlu0 %v225, 124
        %v1168 = vpop.permute.xlu0 %1167
        %1169 = vrot.lane.b32.xlu0 %v226, 124
        %v1170 = vpop.permute.xlu0 %1169
        %1171 = vrot.lane.b32.xlu0 %v227, 124
        %v1172 = vpop.permute.xlu0 %1171
        %1173 = vrot.lane.b32.xlu0 %v228, 124
        %v1174 = vpop.permute.xlu0 %1173
        %v1187 = vmul.f32 %v205, %v1152
        %v1188 = vmul.f32 %v206, %v1154
        %v1189 = vmul.f32 %v207, %v1156
        %v1190 = vmul.f32 %v208, %v1158
        %v1191 = vmul.f32 %v209, %v1160
        %v1192 = vmul.f32 %v210, %v1162
        %v1193 = vmul.f32 %v211, %v1164
        %v1194 = vmul.f32 %v212, %v1166
        %v1195 = vmul.f32 %v213, %v1168
        %v1196 = vmul.f32 %v214, %v1170
        %v1197 = vmul.f32 %v215, %v1172
        %v1198 = vmul.f32 %v216, %v1174
        %v1199 = vsel %vm229, %v1187, 0.0
        %v1200 = vsel %vm229, %v1190, 0.0
        %v1201 = vadd.f32 %v1199, %v1200
        %v1202 = vsel %vm229, %v1193, 0.0
        %v1203 = vadd.f32 %v1201, %v1202
        %v1204 = vsel %vm229, %v1196, 0.0
        %v1205 = vadd.f32 %v1203, %v1204
        %v1206 = vsel %vm229, %v1188, 0.0
        %v1207 = vsel %vm229, %v1191, 0.0
        %v1208 = vadd.f32 %v1206, %v1207
        %v1209 = vsel %vm229, %v1194, 0.0
        %v1210 = vadd.f32 %v1208, %v1209
        %v1211 = vsel %vm229, %v1197, 0.0
        %v1212 = vadd.f32 %v1210, %v1211
        %v1213 = vsel %vm244, %v1189, 0.0
        %v1214 = vsel %vm244, %v1192, 0.0
        %v1215 = vadd.f32 %v1213, %v1214
        %v1216 = vsel %vm244, %v1195, 0.0
        %v1217 = vadd.f32 %v1215, %v1216
        %v1218 = vsel %vm244, %v1198, 0.0
        %v1219 = vadd.f32 %v1217, %v1218
        %1223 = vrot.lane.b32.xlu0 %v1205, 127
        %v1224 = vpop.permute.xlu0 %1223
        %1225 = vrot.lane.b32.xlu0 %v1212, 127
        %v1226 = vpop.permute.xlu0 %1225
        %1227 = vrot.lane.b32.xlu0 %v1219, 127
        %v1228 = vpop.permute.xlu0 %1227
        %v1232 = vadd.f32 %v1205, %v1224
        %v1233 = vadd.f32 %v1212, %v1226
        %v1234 = vadd.f32 %v1219, %v1228
        %1235 = vrot.lane.b32.xlu0 %v1205, 126
        %v1236 = vpop.permute.xlu0 %1235
        %1237 = vrot.lane.b32.xlu0 %v1212, 126
        %v1238 = vpop.permute.xlu0 %1237
        %1239 = vrot.lane.b32.xlu0 %v1219, 126
        %v1240 = vpop.permute.xlu0 %1239
        %v1244 = vadd.f32 %v1232, %v1236
        %v1245 = vadd.f32 %v1233, %v1238
        %v1246 = vadd.f32 %v1234, %v1240
        %v1250 = vrot.slane %v1244, 1
        %v1251 = vrot.slane %v1245, 1
        %v1252 = vsel %vm371, %v1250, %v1251
        %v1253 = vrot.slane %v1246, 1
        %v1254 = vsel %vm371, %v1251, %v1253
        %v1257 = vadd.f32 %v1244, %v1252
        %v1258 = vadd.f32 %v1245, %v1254
        %v1259 = vrot.slane %v1244, 2
        %v1260 = vrot.slane %v1245, 2
        %v1261 = vsel %vm381, %v1259, %v1260
        %v1262 = vrot.slane %v1246, 2
        %v1263 = vsel %vm381, %v1260, %v1262
        %v1266 = vadd.f32 %v1257, %v1261
        %v1267 = vadd.f32 %v1258, %v1263
        %1268 = vrot.lane.b32.xlu0 %v517, 124
        %v1269 = vpop.permute.xlu0 %1268
        %1270 = vrot.lane.b32.xlu0 %v518, 124
        %v1271 = vpop.permute.xlu0 %1270
        %v1274 = vmul.f32 %v389, %v1269
        %v1275 = vmul.f32 %v390, %v1271
        %v1276 = vmul.f32 %v1274, 0.027777778
        %v1277 = vmul.f32 %v1275, 0.027777778
        %v1278 = vsub.f32 %v1266, %v1276
        %v1279 = vsub.f32 %v1267, %v1277
        %1280 = vrot.lane.b32.xlu0 %v586, 124
        %v1281 = vpop.permute.xlu0 %1280
        %1282 = vrot.lane.b32.xlu0 %v598, 124
        %v1283 = vpop.permute.xlu0 %1282
        %v1286 = vmul.f32 %v458, %v1281
        %v1287 = vmul.f32 %v470, %v1283
        %v1288 = vadd.f32 %v1286, 1e-08
        %v1289 = vadd.f32 %v1287, 1e-08
        %v1290 = vrcp.pop %v1288
        %v1291 = vrcp.pop %v1289
        %v1292 = vmul.f32 %v1278, %v1290
        %v1293 = vmul.f32 %v1279, %v1291
        %s1294 = scalar_lea.vmem %s185, 64 [#allocation2]
        %1295 = vst.msk [vmem:[%s1294] sm:$0xff] %vm694, %v1292
        %1296 = vst.msk [vmem:[%s1294 + $0x8] sm:$0xff] %vm694, %v1293
        %1297 = vrot.lane.b32.xlu0 %v217, 123
        %v1298 = vpop.permute.xlu0 %1297
        %1299 = vrot.lane.b32.xlu0 %v218, 123
        %v1300 = vpop.permute.xlu0 %1299
        %1301 = vrot.lane.b32.xlu0 %v219, 123
        %v1302 = vpop.permute.xlu0 %1301
        %1303 = vrot.lane.b32.xlu0 %v220, 123
        %v1304 = vpop.permute.xlu0 %1303
        %1305 = vrot.lane.b32.xlu0 %v221, 123
        %v1306 = vpop.permute.xlu0 %1305
        %1307 = vrot.lane.b32.xlu0 %v222, 123
        %v1308 = vpop.permute.xlu0 %1307
        %1309 = vrot.lane.b32.xlu0 %v223, 123
        %v1310 = vpop.permute.xlu0 %1309
        %1311 = vrot.lane.b32.xlu0 %v224, 123
        %v1312 = vpop.permute.xlu0 %1311
        %1313 = vrot.lane.b32.xlu0 %v225, 123
        %v1314 = vpop.permute.xlu0 %1313
        %1315 = vrot.lane.b32.xlu0 %v226, 123
        %v1316 = vpop.permute.xlu0 %1315
        %1317 = vrot.lane.b32.xlu0 %v227, 123
        %v1318 = vpop.permute.xlu0 %1317
        %1319 = vrot.lane.b32.xlu0 %v228, 123
        %v1320 = vpop.permute.xlu0 %1319
        %v1333 = vmul.f32 %v205, %v1298
        %v1334 = vmul.f32 %v206, %v1300
        %v1335 = vmul.f32 %v207, %v1302
        %v1336 = vmul.f32 %v208, %v1304
        %v1337 = vmul.f32 %v209, %v1306
        %v1338 = vmul.f32 %v210, %v1308
        %v1339 = vmul.f32 %v211, %v1310
        %v1340 = vmul.f32 %v212, %v1312
        %v1341 = vmul.f32 %v213, %v1314
        %v1342 = vmul.f32 %v214, %v1316
        %v1343 = vmul.f32 %v215, %v1318
        %v1344 = vmul.f32 %v216, %v1320
        %v1345 = vsel %vm229, %v1333, 0.0
        %v1346 = vsel %vm229, %v1336, 0.0
        %v1347 = vadd.f32 %v1345, %v1346
        %v1348 = vsel %vm229, %v1339, 0.0
        %v1349 = vadd.f32 %v1347, %v1348
        %v1350 = vsel %vm229, %v1342, 0.0
        %v1351 = vadd.f32 %v1349, %v1350
        %v1352 = vsel %vm229, %v1334, 0.0
        %v1353 = vsel %vm229, %v1337, 0.0
        %v1354 = vadd.f32 %v1352, %v1353
        %v1355 = vsel %vm229, %v1340, 0.0
        %v1356 = vadd.f32 %v1354, %v1355
        %v1357 = vsel %vm229, %v1343, 0.0
        %v1358 = vadd.f32 %v1356, %v1357
        %v1359 = vsel %vm244, %v1335, 0.0
        %v1360 = vsel %vm244, %v1338, 0.0
        %v1361 = vadd.f32 %v1359, %v1360
        %v1362 = vsel %vm244, %v1341, 0.0
        %v1363 = vadd.f32 %v1361, %v1362
        %v1364 = vsel %vm244, %v1344, 0.0
        %v1365 = vadd.f32 %v1363, %v1364
        %1369 = vrot.lane.b32.xlu0 %v1351, 127
        %v1370 = vpop.permute.xlu0 %1369
        %1371 = vrot.lane.b32.xlu0 %v1358, 127
        %v1372 = vpop.permute.xlu0 %1371
        %1373 = vrot.lane.b32.xlu0 %v1365, 127
        %v1374 = vpop.permute.xlu0 %1373
        %v1378 = vadd.f32 %v1351, %v1370
        %v1379 = vadd.f32 %v1358, %v1372
        %v1380 = vadd.f32 %v1365, %v1374
        %1381 = vrot.lane.b32.xlu0 %v1351, 126
        %v1382 = vpop.permute.xlu0 %1381
        %1383 = vrot.lane.b32.xlu0 %v1358, 126
        %v1384 = vpop.permute.xlu0 %1383
        %1385 = vrot.lane.b32.xlu0 %v1365, 126
        %v1386 = vpop.permute.xlu0 %1385
        %v1390 = vadd.f32 %v1378, %v1382
        %v1391 = vadd.f32 %v1379, %v1384
        %v1392 = vadd.f32 %v1380, %v1386
        %v1396 = vrot.slane %v1390, 1
        %v1397 = vrot.slane %v1391, 1
        %v1398 = vsel %vm371, %v1396, %v1397
        %v1399 = vrot.slane %v1392, 1
        %v1400 = vsel %vm371, %v1397, %v1399
        %v1403 = vadd.f32 %v1390, %v1398
        %v1404 = vadd.f32 %v1391, %v1400
        %v1405 = vrot.slane %v1390, 2
        %v1406 = vrot.slane %v1391, 2
        %v1407 = vsel %vm381, %v1405, %v1406
        %v1408 = vrot.slane %v1392, 2
        %v1409 = vsel %vm381, %v1406, %v1408
        %v1412 = vadd.f32 %v1403, %v1407
        %v1413 = vadd.f32 %v1404, %v1409
        %1414 = vrot.lane.b32.xlu0 %v517, 123
        %v1415 = vpop.permute.xlu0 %1414
        %1416 = vrot.lane.b32.xlu0 %v518, 123
        %v1417 = vpop.permute.xlu0 %1416
        %v1420 = vmul.f32 %v389, %v1415
        %v1421 = vmul.f32 %v390, %v1417
        %v1422 = vmul.f32 %v1420, 0.027777778
        %v1423 = vmul.f32 %v1421, 0.027777778
        %v1424 = vsub.f32 %v1412, %v1422
        %v1425 = vsub.f32 %v1413, %v1423
        %1426 = vrot.lane.b32.xlu0 %v586, 123
        %v1427 = vpop.permute.xlu0 %1426
        %1428 = vrot.lane.b32.xlu0 %v598, 123
        %v1429 = vpop.permute.xlu0 %1428
        %v1432 = vmul.f32 %v458, %v1427
        %v1433 = vmul.f32 %v470, %v1429
        %v1434 = vadd.f32 %v1432, 1e-08
        %v1435 = vadd.f32 %v1433, 1e-08
        %v1436 = vrcp.pop %v1434
        %v1437 = vrcp.pop %v1435
        %v1438 = vmul.f32 %v1424, %v1436
        %v1439 = vmul.f32 %v1425, %v1437
        %s1440 = scalar_lea.vmem %s185, 80 [#allocation2]
        %1441 = vst.msk [vmem:[%s1440] sm:$0xff] %vm694, %v1438
        %1442 = vst.msk [vmem:[%s1440 + $0x8] sm:$0xff] %vm694, %v1439
        %1443 = vrot.lane.b32.xlu0 %v217, 122
        %v1444 = vpop.permute.xlu0 %1443
        %1445 = vrot.lane.b32.xlu0 %v218, 122
        %v1446 = vpop.permute.xlu0 %1445
        %1447 = vrot.lane.b32.xlu0 %v219, 122
        %v1448 = vpop.permute.xlu0 %1447
        %1449 = vrot.lane.b32.xlu0 %v220, 122
        %v1450 = vpop.permute.xlu0 %1449
        %1451 = vrot.lane.b32.xlu0 %v221, 122
        %v1452 = vpop.permute.xlu0 %1451
        %1453 = vrot.lane.b32.xlu0 %v222, 122
        %v1454 = vpop.permute.xlu0 %1453
        %1455 = vrot.lane.b32.xlu0 %v223, 122
        %v1456 = vpop.permute.xlu0 %1455
        %1457 = vrot.lane.b32.xlu0 %v224, 122
        %v1458 = vpop.permute.xlu0 %1457
        %1459 = vrot.lane.b32.xlu0 %v225, 122
        %v1460 = vpop.permute.xlu0 %1459
        %1461 = vrot.lane.b32.xlu0 %v226, 122
        %v1462 = vpop.permute.xlu0 %1461
        %1463 = vrot.lane.b32.xlu0 %v227, 122
        %v1464 = vpop.permute.xlu0 %1463
        %1465 = vrot.lane.b32.xlu0 %v228, 122
        %v1466 = vpop.permute.xlu0 %1465
        %v1479 = vmul.f32 %v205, %v1444
        %v1480 = vmul.f32 %v206, %v1446
        %v1481 = vmul.f32 %v207, %v1448
        %v1482 = vmul.f32 %v208, %v1450
        %v1483 = vmul.f32 %v209, %v1452
        %v1484 = vmul.f32 %v210, %v1454
        %v1485 = vmul.f32 %v211, %v1456
        %v1486 = vmul.f32 %v212, %v1458
        %v1487 = vmul.f32 %v213, %v1460
        %v1488 = vmul.f32 %v214, %v1462
        %v1489 = vmul.f32 %v215, %v1464
        %v1490 = vmul.f32 %v216, %v1466
        %v1491 = vsel %vm229, %v1479, 0.0
        %v1492 = vsel %vm229, %v1482, 0.0
        %v1493 = vadd.f32 %v1491, %v1492
        %v1494 = vsel %vm229, %v1485, 0.0
        %v1495 = vadd.f32 %v1493, %v1494
        %v1496 = vsel %vm229, %v1488, 0.0
        %v1497 = vadd.f32 %v1495, %v1496
        %v1498 = vsel %vm229, %v1480, 0.0
        %v1499 = vsel %vm229, %v1483, 0.0
        %v1500 = vadd.f32 %v1498, %v1499
        %v1501 = vsel %vm229, %v1486, 0.0
        %v1502 = vadd.f32 %v1500, %v1501
        %v1503 = vsel %vm229, %v1489, 0.0
        %v1504 = vadd.f32 %v1502, %v1503
        %v1505 = vsel %vm244, %v1481, 0.0
        %v1506 = vsel %vm244, %v1484, 0.0
        %v1507 = vadd.f32 %v1505, %v1506
        %v1508 = vsel %vm244, %v1487, 0.0
        %v1509 = vadd.f32 %v1507, %v1508
        %v1510 = vsel %vm244, %v1490, 0.0
        %v1511 = vadd.f32 %v1509, %v1510
        %1515 = vrot.lane.b32.xlu0 %v1497, 127
        %v1516 = vpop.permute.xlu0 %1515
        %1517 = vrot.lane.b32.xlu0 %v1504, 127
        %v1518 = vpop.permute.xlu0 %1517
        %1519 = vrot.lane.b32.xlu0 %v1511, 127
        %v1520 = vpop.permute.xlu0 %1519
        %v1524 = vadd.f32 %v1497, %v1516
        %v1525 = vadd.f32 %v1504, %v1518
        %v1526 = vadd.f32 %v1511, %v1520
        %1527 = vrot.lane.b32.xlu0 %v1497, 126
        %v1528 = vpop.permute.xlu0 %1527
        %1529 = vrot.lane.b32.xlu0 %v1504, 126
        %v1530 = vpop.permute.xlu0 %1529
        %1531 = vrot.lane.b32.xlu0 %v1511, 126
        %v1532 = vpop.permute.xlu0 %1531
        %v1536 = vadd.f32 %v1524, %v1528
        %v1537 = vadd.f32 %v1525, %v1530
        %v1538 = vadd.f32 %v1526, %v1532
        %v1542 = vrot.slane %v1536, 1
        %v1543 = vrot.slane %v1537, 1
        %v1544 = vsel %vm371, %v1542, %v1543
        %v1545 = vrot.slane %v1538, 1
        %v1546 = vsel %vm371, %v1543, %v1545
        %v1549 = vadd.f32 %v1536, %v1544
        %v1550 = vadd.f32 %v1537, %v1546
        %v1551 = vrot.slane %v1536, 2
        %v1552 = vrot.slane %v1537, 2
        %v1553 = vsel %vm381, %v1551, %v1552
        %v1554 = vrot.slane %v1538, 2
        %v1555 = vsel %vm381, %v1552, %v1554
        %v1558 = vadd.f32 %v1549, %v1553
        %v1559 = vadd.f32 %v1550, %v1555
        %1560 = vrot.lane.b32.xlu0 %v517, 122
        %v1561 = vpop.permute.xlu0 %1560
        %1562 = vrot.lane.b32.xlu0 %v518, 122
        %v1563 = vpop.permute.xlu0 %1562
        %v1566 = vmul.f32 %v389, %v1561
        %v1567 = vmul.f32 %v390, %v1563
        %v1568 = vmul.f32 %v1566, 0.027777778
        %v1569 = vmul.f32 %v1567, 0.027777778
        %v1570 = vsub.f32 %v1558, %v1568
        %v1571 = vsub.f32 %v1559, %v1569
        %1572 = vrot.lane.b32.xlu0 %v586, 122
        %v1573 = vpop.permute.xlu0 %1572
        %1574 = vrot.lane.b32.xlu0 %v598, 122
        %v1575 = vpop.permute.xlu0 %1574
        %v1578 = vmul.f32 %v458, %v1573
        %v1579 = vmul.f32 %v470, %v1575
        %v1580 = vadd.f32 %v1578, 1e-08
        %v1581 = vadd.f32 %v1579, 1e-08
        %v1582 = vrcp.pop %v1580
        %v1583 = vrcp.pop %v1581
        %v1584 = vmul.f32 %v1570, %v1582
        %v1585 = vmul.f32 %v1571, %v1583
        %s1586 = scalar_lea.vmem %s185, 96 [#allocation2]
        %1587 = vst.msk [vmem:[%s1586] sm:$0xff] %vm694, %v1584
        %1588 = vst.msk [vmem:[%s1586 + $0x8] sm:$0xff] %vm694, %v1585
        %s1589 = sand.u32 %s94, 1
        %s1590 = scalar_lea.sflag [#allocation3], %s1589
        %s1591 = sand.u32 %s94, 1
        %s1592 = smul.addr %s1591, 112
        %s1593 = scalar_lea.vmem [#allocation2], %s1592
        // Predicated region
        $region29: #{tpu_custom_call.1} parent=27 // pred_check
          %p1594 = pneg %p104
        $region30: #{tpu_custom_call.1} parent=27 // pred_check_branch
          %1596 = sbr.rel (%p1594) target = $region32
        $region31: #{tpu_custom_call.1} parent=27 // pred_region
          %s1597 = smul.u32 2, %s21
          %1599 = vsyncadd %s1590, 0
          %s1600 = smul.addr %s20, 14
          %s1601 = sadd.s32 %s1597, %s1600
          %s1602 = smul.addr %s1601, 8
          %s1603 = scalar_lea.hbm %s2, %s1602
          %s1604 = sshll.u32 %s1593, 4
          %s1605 = int_to_ptr.vmem [resolvable:$true] %s1604
          %s1606 = sshll.u32 %s1603, 4
          %s1607 = int_to_ptr.hbm [resolvable:$true] %s1606
          %1612 = dma.vmem_to_hbm [thread:$0]  %s1605, 1792, %s1607, %s1590, 128, 128, 8
        $region32: #{tpu_custom_call.1} parent=27 // pred_fallthru
          _
      $region28: #{tpu_custom_call.1} parent=5 // pred_fallthru
        _
      %p1613 = scmp.le.s32.totalorder 2, %s11
      // Predicated region
      $region33: #{tpu_custom_call.1} parent=5 // pred_check
        %p1614 = pneg %p1613
      $region34: #{tpu_custom_call.1} parent=5 // pred_check_branch
        %1616 = sbr.rel (%p1614) target = $region36
      $region35: #{tpu_custom_call.1} parent=5 // pred_region
        %s1617 = ssub.s32 %s11, 2
        // Predicated region
        $region37: #{tpu_custom_call.1} parent=35 // pred_check
          %p1618 = pneg %p110
        $region38: #{tpu_custom_call.1} parent=35 // pred_check_branch
          %1620 = sbr.rel (%p1618) target = $region40
        $region39: #{tpu_custom_call.1} parent=35 // pred_region
          %s1621 = sand.u32 %s95, 1
          %s1622 = scalar_lea.sflag [#allocation3], %s1621
          %s1623 = sand.u32 %s95, 1
          %s1624 = smul.addr %s1623, 112
          %s1625 = scalar_lea.vmem [#allocation2], %s1624
          %1627 = dma.done %s1622, 1792
        $region40: #{tpu_custom_call.1} parent=35 // pred_fallthru
          _
      $region36: #{tpu_custom_call.1} parent=5 // pred_fallthru
        _
    $region6: #{tpu_custom_call.1} parent=1 // loop_footer
      %s15 = sadd.s32 1, %s11
    $region7: #{tpu_custom_call.1} parent=1 // loop_footer_branch
      %10 = sbr.rel target = $region3
    $region8: #{tpu_custom_call.1} parent=1 // loop_exit
      _
    %1628 = vsyncpa [#allocation3], 1
    %s1629 = scalar_lea.sflag [#allocation3], 1
    %1630 = vsyncpa %s1629, 1

</llo_original>
